<compile_context>
chip_gen: v7x
topology: tpu7x:2x2x1
jax: 0.10.0
libtpu: 0.0.40
codegen_flags: <defaults>
</compile_context>

<pallas_src>
import jax
import jax.numpy as jnp
import numpy as np
from jax.experimental import pallas as pl
from jax.experimental.pallas import tpu as pltpu


# ----------------------------------------------------------------------------- kernels

def round1_kernel(a_ref, x_ref, wt_ref, h1_ref, c0_ref):
    # a: (TB, Nn, Nn) bf16  block-diagonal adjacency tile
    # x: (TB, Nn, D)  bf16  node-feature tile,  wt: (D, D) bf16 == W^T
    # h1: (TB, Nn, D) bf16  round-1 propagation,  c0: (TB, 1) f32 col-0 sum of squares
    TB, Nn, D = x_ref.shape
    # one (TB*Nn, D) x (D, D) MXU pass for the whole tile (reshape is layout preserving,
    # Nn and D are padded to multiples of 128 in the wrapper)
    xw = jnp.dot(x_ref[...].reshape(TB * Nn, D), wt_ref[...],
                 preferred_element_type=jnp.float32)
    h1 = jnp.einsum('bij,bjd->bid', a_ref[...],
                    xw.reshape(TB, Nn, D).astype(jnp.bfloat16),
                    preferred_element_type=jnp.float32)          # (TB, Nn, D) f32
    h1_ref[...] = h1.astype(jnp.bfloat16)

    # column-0 squared norm per block, computed from the f32 accumulator (stays f32)
    lane = jax.lax.broadcasted_iota(jnp.int32, (Nn, D), 1)
    col0 = (lane == 0).astype(jnp.float32)                       # (Nn, D)
    c0_ref[...] = jnp.sum(jnp.sum(h1 * h1 * col0[None, :, :], axis=2),
                          axis=1, keepdims=True)                 # (TB, 1)


def walk_kernel(a_ref, h1_ref, wts_ref, wts2_ref, tr_ref):
    # a: (TB, Nn, Nn) bf16,  h1: (TB, Nn, D) bf16 (round-1 result)
    # wts = W^T/s, wts2 = W^T/s^2 (bf16; 1/s folded once in the wrapper)
    # tr: (TB, WL) f32 per-block traces of the walk steps
    TB, Nn, D = h1_ref.shape
    WL = tr_ref.shape[1]
    a = a_ref[...]
    wts = wts_ref[...]

    def step(h_bf16, w):
        hw = jnp.dot(h_bf16.reshape(TB * Nn, D), w,
                     preferred_element_type=jnp.float32)
        return jnp.einsum('bij,bjd->bid', a,
                          hw.reshape(TB, Nn, D).astype(jnp.bfloat16),
                          preferred_element_type=jnp.float32)    # (TB, Nn, D) f32

    # ---- WRNN round 2: both 1/s factors folded into wts2
    h = step(h1_ref[...], wts2_ref[...])

    # ---- diagonal trace mask, hoisted; implicit broadcast over the block dim
    r = jax.lax.broadcasted_iota(jnp.int32, (Nn, D), 0)
    c = jax.lax.broadcasted_iota(jnp.int32, (Nn, D), 1)
    diag = (r == c).astype(jnp.float32)                          # (Nn, D)

    # ---- trace walk (walk_len is a compile-time constant -> static unroll);
    #      traces stored at the static column i (no carried where-chain)
    for i in range(WL):
        h = step(h.astype(jnp.bfloat16), wts)
        tr_ref[:, i:i + 1] = jnp.sum(jnp.sum(h * diag[None, :, :], axis=2),
                                     axis=1, keepdims=True)      # (TB, 1)


def postproc_kernel(tr_ref, y_ref, out_ref):
    # tr: (B_pad, WL) f32 traces; rows [0, B) perturbed blocks, row B = non-perturbed graph
    # y: (B, 1) labels, out: (B, WL)
    B, WL = out_ref.shape
    p = tr_ref[0:B, :]
    npv = tr_ref[B:B + 1, :]
    p = (p - npv) * 100.0
    p = p * ((y_ref[...] - 0.5) * 2.0)                           # per-row +/-1
    mu = jnp.sum(p, axis=0, keepdims=True) * (1.0 / B)
    d = p - mu
    # torch.std default ddof=1; B == 1 gives inf/NaN, matching the PyTorch module
    var = jnp.sum(d * d, axis=0, keepdims=True) * (1.0 / (B - 1))
    out_ref[...] = d * jax.lax.rsqrt(var)


# ----------------------------------------------------------------------------- wrappers

def _round_up(v, m):
    return ((v + m - 1) // m) * m


def _full_spec(shape):
    return pl.BlockSpec(shape, lambda i: (0,) * len(shape))


def _compiler_params(dim_sem):
    # Generation-aware scoped-VMEM limit: raise above the 32 MiB default but leave
    # headroom below physical capacity (v7x: 64 MiB physical -> ~48 MiB scoped,
    # v5e/v6e: 128 MiB -> ~96 MiB scoped).
    try:
        cap = int(pltpu.get_tpu_info().vmem_capacity_bytes)
        limit = min(cap - 16 * 1024 * 1024, (cap * 3) // 4)
        limit = max(limit, 32 * 1024 * 1024)
    except Exception:
        limit = None
    return pltpu.CompilerParams(dimension_semantics=dim_sem, vmem_limit_bytes=limit)


def dense_adjacency(edge_index, num_nodes):
    # PyG MessagePassing(aggr='add'), flow source->target: out[dst] += x[src]
    # TODO(synk): the irregular edge-index scatter-add has no clean Pallas equivalent;
    #             it stays as a plain-JAX .at[].add in the wrapper.
    src = edge_index[0]
    dst = edge_index[1]
    a = jnp.zeros((num_nodes, num_nodes), dtype=jnp.float32)
    return a.at[dst, src].add(1.0)


def batched_adjacency(edge_index, batch, n_nodes):
    # PyG-style batched graph is block-diagonal (edges never cross batch blocks),
    # so store it as (B, Nn, Nn): A[b, dst % Nn, src % Nn] += 1 with b = dst // Nn.
    src = edge_index[0]
    dst = edge_index[1]
    b = dst // n_nodes
    a = jnp.zeros((batch, n_nodes, n_nodes), dtype=jnp.float32)
    return a.at[b, dst % n_nodes, src % n_nodes].add(1.0)


def graphnet_forward(x_p, x_np, y, edge_index_p, edge_index_np, W, walk_len, n_nodes,
                     block_batch=2):
    """Batch-tiled Pallas implementation of GraphNet.forward."""
    B = y.shape[0]
    D = x_p.shape[1]
    Nn = n_nodes

    # lane/MXU-friendly padding (zero rows/cols never affect propagation, norm or traces)
    Nn_p = _round_up(Nn, 128)
    D_p = _round_up(D, 128)

    B_all = B + 1                       # last block = non-perturbed graph
    TB = min(block_batch, B_all)        # batch blocks per grid step
    B_pad = _round_up(B_all, TB)
    num_tiles = B_pad // TB

    # ---- block-diagonal batched adjacency, non-perturbed graph appended as block B
    a_p = batched_adjacency(edge_index_p, B, Nn)                 # (B, Nn, Nn)
    a_np = dense_adjacency(edge_index_np, Nn)                    # (Nn, Nn)
    a_all = jnp.zeros((B_pad, Nn_p, Nn_p), jnp.float32)
    a_all = a_all.at[:B, :Nn, :Nn].set(a_p)
    a_all = a_all.at[B, :Nn, :Nn].set(a_np)
    a_all = a_all.astype(jnp.bfloat16)                           # small ints: exact in bf16

    x_all = jnp.zeros((B_pad, Nn_p, D_p), jnp.float32)
    x_all = x_all.at[:B, :Nn, :D].set(jnp.reshape(x_p, (B, Nn, D)))
    x_all = x_all.at[B, :Nn, :D].set(x_np)
    x_all = x_all.astype(jnp.bfloat16)

    wt = jnp.zeros((D_p, D_p), jnp.float32).at[:D, :D].set(W.T)  # nn.Linear: x @ W^T

    cp_grid = _compiler_params(("parallel",))

    # ---- phase 1: round-1 propagation + per-block column-0 sum of squares
    h1, c0 = pl.pallas_call(
        round1_kernel,
        out_shape=(jax.ShapeDtypeStruct((B_pad, Nn_p, D_p), jnp.bfloat16),
                   jax.ShapeDtypeStruct((num_tiles, TB, 1), jnp.float32)),
        grid=(num_tiles,),
        in_specs=[pl.BlockSpec((TB, Nn_p, Nn_p), lambda t: (t, 0, 0)),
                  pl.BlockSpec((TB, Nn_p, D_p), lambda t: (t, 0, 0)),
                  pl.BlockSpec((D_p, D_p), lambda t: (0, 0))],
        out_specs=(pl.BlockSpec((TB, Nn_p, D_p), lambda t: (t, 0, 0)),
                   pl.BlockSpec((None, TB, 1), lambda t: (t, 0, 0))),
        compiler_params=cp_grid,
    )(a_all, x_all, wt.astype(jnp.bfloat16))

    # ---- scale_factor = ||h_p[:, 0]||_2 over the perturbed blocks only; fold 1/s into
    #      the weights once (f32), then cast the folded weights to bf16 for the MXU.
    ss = jnp.sum(c0.reshape(B_pad)[:B])
    # TODO(synk): no guard for scale == 0 (matches the PyTorch module, which also has none).
    inv_s = jax.lax.rsqrt(ss)
    wts = (wt * inv_s).astype(jnp.bfloat16)                      # W^T / s   : every walk round
    wts2 = (wt * (inv_s * inv_s)).astype(jnp.bfloat16)           # W^T / s^2 : round 2

    # ---- phase 2: round 2 + walk_len trace walk
    traces = pl.pallas_call(
        walk_kernel,
        out_shape=jax.ShapeDtypeStruct((num_tiles, TB, walk_len), jnp.float32),
        grid=(num_tiles,),
        in_specs=[pl.BlockSpec((TB, Nn_p, Nn_p), lambda t: (t, 0, 0)),
                  pl.BlockSpec((TB, Nn_p, D_p), lambda t: (t, 0, 0)),
                  pl.BlockSpec((D_p, D_p), lambda t: (0, 0)),
                  pl.BlockSpec((D_p, D_p), lambda t: (0, 0))],
        out_specs=pl.BlockSpec((None, TB, walk_len), lambda t: (t, 0, 0)),
        compiler_params=cp_grid,
    )(a_all, h1, wts, wts2)

    # ---- tiny follow-up call: (p - np)*100, label sign flip, mean/std(ddof=1) norm
    tr_flat = traces.reshape(B_pad, walk_len)                    # row B = non-perturbed graph
    out = pl.pallas_call(
        postproc_kernel,
        out_shape=jax.ShapeDtypeStruct((B, walk_len), jnp.float32),
        grid=(1,),
        in_specs=[_full_spec((B_pad, walk_len)), _full_spec((B, 1))],
        out_specs=_full_spec((B, walk_len)),
        compiler_params=_compiler_params(("arbitrary",)),
    )(tr_flat, y)
    return out


# ----------------------------------------------------------------------------- reference

def reference_forward(x_p, x_np, y, edge_index_p, edge_index_np, W, walk_len, n_nodes):
    hi = jax.lax.Precision.HIGHEST
    a_p = dense_adjacency(edge_index_p, x_p.shape[0])
    a_np = dense_adjacency(edge_index_np, x_np.shape[0])
    wrnn = lambda a, h: jnp.dot(a, jnp.dot(h, W.T, precision=hi), precision=hi)
    h_p = wrnn(a_p, x_p)
    h_np = wrnn(a_np, x_np)
    scale = jnp.linalg.norm(h_p[:, 0])
    h_p = h_p / scale
    h_np = h_np / scale
    h_p = wrnn(a_p, h_p) / scale
    h_np = wrnn(a_np, h_np) / scale
    batch = y.shape[0]
    p_cols, np_cols = [], []
    for _ in range(walk_len):
        h_p = wrnn(a_p, h_p) / scale
        h_np = wrnn(a_np, h_np) / scale
        np_cols.append(jnp.trace(h_np))
        p_cols.append(jnp.array([jnp.trace(h_p[j * n_nodes:(j + 1) * n_nodes, :])
                                 for j in range(batch)]))
    np_arr = jnp.stack(np_cols)[None, :]
    p_arr = jnp.stack(p_cols, axis=1)
    p_arr = (p_arr - np_arr) * 100.0
    p_arr = p_arr * ((y - 0.5) * 2.0)
    mu = jnp.mean(p_arr, axis=0, keepdims=True)
    std = jnp.std(p_arr, axis=0, ddof=1, keepdims=True)
    return (p_arr - mu) / std


# ----------------------------------------------------------------------------- main

if __name__ == "__main__":
    n_nodes = 8        # nodes per graph (original n = 297)
    hidden = 8         # hidden_channels (original uses n)
    batch = 3          # batch_size
    walk_len = 7       # GraphNet default

    key = jax.random.PRNGKey(0)

    # node features: identity (original: x = torch.eye(n)); perturbed batch stacks them
    x_np_feat = jnp.eye(n_nodes, hidden, dtype=jnp.float32)
    x_p_feat = jnp.tile(x_np_feat, (batch, 1))

    # non-perturbed graph: self loops + directed ring
    src, dst = [], []
    for v in range(n_nodes):
        src += [v, v]
        dst += [v, (v + 1) % n_nodes]
    edge_index_np = jnp.array([src, dst], dtype=jnp.int32)

    # perturbed graphs: one block of n_nodes per batch element, some with extra chords
    chords = {1: [(0, 4)], 2: [(1, 5), (2, 6)]}
    src_p, dst_p = [], []
    for b in range(batch):
        off = b * n_nodes
        for v in range(n_nodes):
            src_p += [off + v, off + v]
            dst_p += [off + v, off + (v + 1) % n_nodes]
        for (u, v) in chords.get(b, []):
            src_p += [off + u, off + v]
            dst_p += [off + v, off + u]
    edge_index_p = jnp.array([src_p, dst_p], dtype=jnp.int32)

    # binary labels y (batch, 1)
    y = jax.random.bernoulli(key, 0.5, (batch, 1)).astype(jnp.float32)

    # deterministic parameter: GCNConv_nonorm's Linear weight is initialized to eye()
    W = jnp.eye(hidden, dtype=jnp.float32)

    out = graphnet_forward(x_p_feat, x_np_feat, y, edge_index_p, edge_index_np,
                           W, walk_len, n_nodes, block_batch=2)
    out = jax.block_until_ready(out)

    ref = reference_forward(x_p_feat, x_np_feat, y, edge_index_p, edge_index_np,
                            W, walk_len, n_nodes)
    np.testing.assert_allclose(np.asarray(out), np.asarray(ref), rtol=5e-2, atol=5e-2)

    print("KERNEL_OK")
</pallas_src>

<mosaic_0001>
module attributes {stable_mosaic.version = 11 : i64} {
  func.func @round1_kernel(%arg0: i32, %arg1: memref<2x128x128xbf16, #tpu.memory_space<vmem>>, %arg2: memref<2x128x128xbf16, #tpu.memory_space<vmem>>, %arg3: memref<128x128xbf16, #tpu.memory_space<vmem>>, %arg4: memref<2x128x128xbf16, #tpu.memory_space<vmem>>, %arg5: memref<1x2x1xf32, #tpu.memory_space<vmem>>) attributes {dimension_semantics = [#tpu.dimension_semantics<parallel>], iteration_bounds = array<i64: 2>, scalar_prefetch = 0 : i64, scratch_operands = 0 : i64, tpu.core_type = #tpu.core_type<tc>, window_params = [{transform_indices = @transform_0, window_bounds = array<i64: 2, 128, 128>}, {transform_indices = @transform_1, window_bounds = array<i64: 2, 128, 128>}, {pipeline_mode = #tpu.pipeline_mode<synchronous>, transform_indices = @transform_2, window_bounds = array<i64: 128, 128>}, {transform_indices = @transform_3, window_bounds = array<i64: 2, 128, 128>}, {transform_indices = @transform_4, window_bounds = array<i64: 1, 2, 1>}]} {
    %c0 = arith.constant 0 : index
    %c0_0 = arith.constant 0 : index
    %c0_1 = arith.constant 0 : index
    %0 = vector.load %arg2[%c0, %c0_0, %c0_1] : memref<2x128x128xbf16, #tpu.memory_space<vmem>>, vector<2x128x128xbf16>
    %1 = vector.shape_cast %0 : vector<2x128x128xbf16> to vector<256x128xbf16>
    %c0_2 = arith.constant 0 : index
    %c0_3 = arith.constant 0 : index
    %2 = vector.load %arg3[%c0_2, %c0_3] : memref<128x128xbf16, #tpu.memory_space<vmem>>, vector<128x128xbf16>
    %cst = arith.constant dense<0.000000e+00> : vector<256x128xf32>
    %3 = tpu.matmul %1, %2, %cst {dimension_numbers = #tpu.dot_dimension_numbers<[1], [0], [0], [1], [0, 0, 1, 1], [], []>} : vector<256x128xbf16>, vector<128x128xbf16>, vector<256x128xf32> -> vector<256x128xf32>
    %c0_4 = arith.constant 0 : index
    %c0_5 = arith.constant 0 : index
    %c0_6 = arith.constant 0 : index
    %4 = vector.load %arg1[%c0_4, %c0_5, %c0_6] : memref<2x128x128xbf16, #tpu.memory_space<vmem>>, vector<2x128x128xbf16>
    %5 = vector.shape_cast %3 : vector<256x128xf32> to vector<2x128x128xf32>
    %6 = arith.truncf %5 : vector<2x128x128xf32> to vector<2x128x128xbf16>
    "tpu.trace_start"() <{level = 10 : i32, message = "bij,bjd->bid"}> : () -> ()
    %cst_7 = arith.constant dense<0.000000e+00> : vector<2x128x128xf32>
    %7 = tpu.matmul %4, %6, %cst_7 {dimension_numbers = #tpu.dot_dimension_numbers<[2], [1], [1], [2], [0, 0, 0, 1, 1, 2], [0], [0]>} : vector<2x128x128xbf16>, vector<2x128x128xbf16>, vector<2x128x128xf32> -> vector<2x128x128xf32>
    "tpu.trace_stop"() : () -> ()
    %8 = arith.truncf %7 : vector<2x128x128xf32> to vector<2x128x128xbf16>
    %c0_8 = arith.constant 0 : index
    %c0_9 = arith.constant 0 : index
    %c0_10 = arith.constant 0 : index
    %9 = vector.load %arg4[%c0_8, %c0_9, %c0_10] : memref<2x128x128xbf16, #tpu.memory_space<vmem>>, vector<2x128x128xbf16>
    tpu.vector_store %arg4[%c0_8, %c0_9, %c0_10], %8 {strides = array<i32>} : memref<2x128x128xbf16, #tpu.memory_space<vmem>>, vector<2x128x128xbf16>,
    %10 = tpu.iota {dimensions = array<i32: 1>} : vector<128x128xi32>
    %c0_i32 = arith.constant 0 : i32
    %11 = vector.broadcast %c0_i32 : i32 to vector<128x128xi32>
    %12 = arith.cmpi eq, %10, %11 : vector<128x128xi32>
    %13 = arith.extui %12 : vector<128x128xi1> to vector<128x128xi32>
    %14 = arith.sitofp %13 : vector<128x128xi32> to vector<128x128xf32>
    %15 = arith.mulf %7, %7 : vector<2x128x128xf32>
    %16 = vector.shape_cast %14 : vector<128x128xf32> to vector<1x128x128xf32>
    %17 = vector.broadcast %16 : vector<1x128x128xf32> to vector<2x128x128xf32>
    %18 = arith.mulf %15, %17 : vector<2x128x128xf32>
    %cst_11 = arith.constant dense<0.000000e+00> : vector<2x128xf32>
    %19 = vector.multi_reduction <add>, %18, %cst_11 [2] : vector<2x128x128xf32> to vector<2x128xf32>
    %cst_12 = arith.constant dense<0.000000e+00> : vector<2xf32>
    %20 = vector.multi_reduction <add>, %19, %cst_12 [1] : vector<2x128xf32> to vector<2xf32>
    %21 = vector.shape_cast %20 : vector<2xf32> to vector<2x1xf32>
    %c0_13 = arith.constant 0 : index
    %c0_14 = arith.constant 0 : index
    %c0_15 = arith.constant 0 : index
    %22 = vector.load %arg5[%c0_13, %c0_14, %c0_15] : memref<1x2x1xf32, #tpu.memory_space<vmem>>, vector<1x2x1xf32>
    %23 = vector.shape_cast %22 : vector<1x2x1xf32> to vector<2x1xf32>
    %24 = vector.shape_cast %21 : vector<2x1xf32> to vector<1x2x1xf32>
    tpu.vector_store %arg5[%c0_13, %c0_14, %c0_15], %24 {strides = array<i32>} : memref<1x2x1xf32, #tpu.memory_space<vmem>>, vector<1x2x1xf32>,
    return
  }
  func.func @transform_0(%arg0: i32) -> (i32, i32, i32) {
    %c0_i32 = arith.constant 0 : i32
    %c0_i32_0 = arith.constant 0 : i32
    %c0_i32_1 = arith.constant 0 : i32
    return %arg0, %c0_i32, %c0_i32_0 : i32, i32, i32
  }
  func.func @transform_1(%arg0: i32) -> (i32, i32, i32) {
    %c0_i32 = arith.constant 0 : i32
    %c0_i32_0 = arith.constant 0 : i32
    %c0_i32_1 = arith.constant 0 : i32
    return %arg0, %c0_i32, %c0_i32_0 : i32, i32, i32
  }
  func.func @transform_2(%arg0: i32) -> (i32, i32) {
    %c0_i32 = arith.constant 0 : i32
    %c0_i32_0 = arith.constant 0 : i32
    %c0_i32_1 = arith.constant 0 : i32
    return %c0_i32, %c0_i32_0 : i32, i32
  }
  func.func @transform_3(%arg0: i32) -> (i32, i32, i32) {
    %c0_i32 = arith.constant 0 : i32
    %c0_i32_0 = arith.constant 0 : i32
    %c0_i32_1 = arith.constant 0 : i32
    return %arg0, %c0_i32, %c0_i32_0 : i32, i32, i32
  }
  func.func @transform_4(%arg0: i32) -> (i32, i32, i32) {
    %c0_i32 = arith.constant 0 : i32
    %c0_i32_0 = arith.constant 0 : i32
    %c0_i32_1 = arith.constant 0 : i32
    return %arg0, %c0_i32, %c0_i32_0 : i32, i32, i32
  }
}

</mosaic_0001>

<llo_original>
// kernel: tpu_custom_call.1
$region0: #{tpu_custom_call.1}
  #allocation0 [shape = 'u32[]', space=smem, size = 0x4, offset = 0x4, fixed_abs, tag = 'smem constant byte address 0x4 - core index']
  #allocation1 [shape = 'u32[144,128]{1,0:T(1,128)}', space=vmem, size = 0x12000, scoped, tag = 'internal scratch']
  %s0 = inlined_call_operand.hbm [shape: bf16[4,128,128], index: 0, kind: input, shape index: {}]
  %s1 = inlined_call_operand.hbm [shape: bf16[4,128,128], index: 1, kind: input, shape index: {}]
  %s2 = inlined_call_operand.hbm [shape: bf16[128,128], index: 2, kind: input, shape index: {}]
  %s3 = inlined_call_operand.hbm [shape: bf16[4,128,128], index: 3, kind: output, shape index: {0}]
  %s4 = inlined_call_operand.vmem [shape: f32[2,2,1], index: 4, kind: output, shape index: {1}]
  %5 = xla_tuple %s3, %s4
  %s6 = sld [smem:[#allocation0]]
  $region65: #{tpu_custom_call.1} parent=0
    _
  %s8 = ssub.s32 1, %s6
  %s9 = scalar_select 0, %s8, %s6
  $region1: #{tpu_custom_call.1} parent=0
    #allocation2 [shape = 'u8[131072]{0}', space=vmem, size = 0x20000, scoped, tag = 'input window, operand 0']
    #allocation3 [shape = 's32[2]{0}', space=sflag, size = 0x8, scoped, tag = 'scoped memory for tpu_custom_call.1']
    #allocation4 [shape = 's32[2]{0}', space=sflag, size = 0x8, scoped, tag = 'scoped memory for tpu_custom_call.1']
    #allocation5 [shape = 'u8[131072]{0}', space=vmem, size = 0x20000, scoped, tag = 'input window, operand 1']
    #allocation6 [shape = 's32[2]{0}', space=sflag, size = 0x8, scoped, tag = 'scoped memory for tpu_custom_call.1']
    #allocation7 [shape = 'u8[32768]{0}', space=vmem, size = 0x8000, scoped, tag = 'input window, operand 2, single buffered']
    #allocation8 [shape = 'u8[131072]{0}', space=vmem, size = 0x20000, scoped, tag = 'output window, operand 0']
    %10 = vsyncpa [#allocation3], 0
    %s11 = scalar_lea.sflag [#allocation3], 1
    %12 = vsyncpa %s11, 0
    %13 = vsyncpa [#allocation6], 0
    %s14 = scalar_lea.sflag [#allocation6], 1
    %15 = vsyncpa %s14, 0
    %16 = vsyncpa [#allocation4], 0
    %s17 = scalar_lea.sflag [#allocation4], 1
    %18 = vsyncpa %s17, 0
    loop: start=0, step=1, limit=4
    $region2: #{tpu_custom_call.1} parent=1 // loop_pre_header
      _
    $region3: #{tpu_custom_call.1} parent=1 // loop_header
      %s20 = sphi 0, %s24
      %p21 = scmp.ge.s32.totalorder %s20, 4
      %s30 = sphi 0, %s32
      %s33 = sphi 0, %s30
      %s34 = sphi 0, %s33
      %s50 = sphi 0, %s34
      %s56 = sphi 0, %s58
      %s59 = sphi 0, %s56
      %s60 = sphi 0, %s59
      %s76 = sphi 0, %s60
      %s80 = sphi 0, %s80
      %s82 = sphi 0, %s80
      %s83 = sphi 0, %s82
      %s97 = sphi 0, %s83
      %s103 = sphi 0, %s105
      %s106 = sphi 0, %s103
      %s107 = sphi 0, %s106
      %s123 = sphi 0, %s107
      %s129 = sphi 0, %s131
      %s132 = sphi 0, %s129
      %s133 = sphi 0, %s132
      %s149 = sphi 0, %s133
    $region4: #{tpu_custom_call.1} parent=1 // loop_header_branch
      %23 = sbr.rel (%p21) target = $region8
    $region5: #{tpu_custom_call.1} parent=1 // loop_body
      %s25 = ssub.s32 %s20, 1
      %s26 = ssub.s32 %s20, 2
      %s27 = sadd.s32 %s20, 1
      %s28 = ssub.s32 %s20, %s27
      %p29 = scmp.eq.s32.totalorder %s28, 0
      %s31 = sadd.s32 %s30, 1
      %s32 = scalar_select %p29, %s30, %s31
      %p35 = pneg %p29
      %p36 = scmp.eq.s32.totalorder %s20, 1
      %p37 = por %p35, %p36
      %p38 = scmp.ne.s32.totalorder %s30, %s33
      %p39 = scmp.eq.s32.totalorder %s20, 0
      %p40 = por %p38, %p39
      %p41 = scmp.ne.s32.totalorder %s30, %s33
      %p42 = scmp.eq.s32.totalorder %s25, 1
      %p43 = por %p41, %p42
      %p44 = scmp.ne.s32.totalorder %s33, %s34
      %p45 = scmp.eq.s32.totalorder %s25, 0
      %p46 = por %p44, %p45
      %p47 = scmp.ne.s32.totalorder %s33, %s34
      %p48 = scmp.eq.s32.totalorder %s26, 1
      %p49 = por %p47, %p48
      %p51 = scmp.ne.s32.totalorder %s34, %s50
      %p52 = scmp.eq.s32.totalorder %s26, 0
      %p53 = por %p51, %p52
      %s54 = ssub.s32 %s20, %s27
      %p55 = scmp.eq.s32.totalorder %s54, 0
      %s57 = sadd.s32 %s56, 1
      %s58 = scalar_select %p55, %s56, %s57
      %p61 = pneg %p55
      %p62 = scmp.eq.s32.totalorder %s20, 1
      %p63 = por %p61, %p62
      %p64 = scmp.ne.s32.totalorder %s56, %s59
      %p65 = scmp.eq.s32.totalorder %s20, 0
      %p66 = por %p64, %p65
      %p67 = scmp.ne.s32.totalorder %s56, %s59
      %p68 = scmp.eq.s32.totalorder %s25, 1
      %p69 = por %p67, %p68
      %p70 = scmp.ne.s32.totalorder %s59, %s60
      %p71 = scmp.eq.s32.totalorder %s25, 0
      %p72 = por %p70, %p71
      %p73 = scmp.ne.s32.totalorder %s59, %s60
      %p74 = scmp.eq.s32.totalorder %s26, 1
      %p75 = por %p73, %p74
      %p77 = scmp.ne.s32.totalorder %s60, %s76
      %p78 = scmp.eq.s32.totalorder %s26, 0
      %p79 = por %p77, %p78
      %s81 = sadd.s32 %s80, 1
      %p84 = scmp.eq.s32.totalorder %s20, 1
      %p85 = scmp.ne.s32.totalorder %s80, %s82
      %p86 = scmp.eq.s32.totalorder %s20, 0
      %p87 = por %p85, %p86
      %p88 = scmp.ne.s32.totalorder %s80, %s82
      %p89 = scmp.eq.s32.totalorder %s25, 1
      %p90 = por %p88, %p89
      %p91 = scmp.ne.s32.totalorder %s82, %s83
      %p92 = scmp.eq.s32.totalorder %s25, 0
      %p93 = por %p91, %p92
      %p94 = scmp.ne.s32.totalorder %s82, %s83
      %p95 = scmp.eq.s32.totalorder %s26, 1
      %p96 = por %p94, %p95
      %p98 = scmp.ne.s32.totalorder %s83, %s97
      %p99 = scmp.eq.s32.totalorder %s26, 0
      %p100 = por %p98, %p99
      %s101 = ssub.s32 %s20, %s27
      %p102 = scmp.eq.s32.totalorder %s101, 0
      %s104 = sadd.s32 %s103, 1
      %s105 = scalar_select %p102, %s103, %s104
      %p108 = pneg %p102
      %p109 = scmp.eq.s32.totalorder %s20, 1
      %p110 = por %p108, %p109
      %p111 = scmp.ne.s32.totalorder %s103, %s106
      %p112 = scmp.eq.s32.totalorder %s20, 0
      %p113 = por %p111, %p112
      %p114 = scmp.ne.s32.totalorder %s103, %s106
      %p115 = scmp.eq.s32.totalorder %s25, 1
      %p116 = por %p114, %p115
      %p117 = scmp.ne.s32.totalorder %s106, %s107
      %p118 = scmp.eq.s32.totalorder %s25, 0
      %p119 = por %p117, %p118
      %p120 = scmp.ne.s32.totalorder %s106, %s107
      %p121 = scmp.eq.s32.totalorder %s26, 1
      %p122 = por %p120, %p121
      %p124 = scmp.ne.s32.totalorder %s107, %s123
      %p125 = scmp.eq.s32.totalorder %s26, 0
      %p126 = por %p124, %p125
      %s127 = ssub.s32 %s20, %s27
      %p128 = scmp.eq.s32.totalorder %s127, 0
      %s130 = sadd.s32 %s129, 1
      %s131 = scalar_select %p128, %s129, %s130
      %p134 = pneg %p128
      %p135 = scmp.eq.s32.totalorder %s20, 1
      %p136 = por %p134, %p135
      %p137 = scmp.ne.s32.totalorder %s129, %s132
      %p138 = scmp.eq.s32.totalorder %s20, 0
      %p139 = por %p137, %p138
      %p140 = scmp.ne.s32.totalorder %s129, %s132
      %p141 = scmp.eq.s32.totalorder %s25, 1
      %p142 = por %p140, %p141
      %p143 = scmp.ne.s32.totalorder %s132, %s133
      %p144 = scmp.eq.s32.totalorder %s25, 0
      %p145 = por %p143, %p144
      %p146 = scmp.ne.s32.totalorder %s132, %s133
      %p147 = scmp.eq.s32.totalorder %s26, 1
      %p148 = por %p146, %p147
      %p150 = scmp.ne.s32.totalorder %s133, %s149
      %p151 = scmp.eq.s32.totalorder %s26, 0
      %p152 = por %p150, %p151
      %p153 = scmp.le.s32.totalorder 1, %s20
      %p154 = scmp.lt.s32.totalorder %s20, 3
      %p155 = pnand %p153, %p154
      %p156 = pneg %p155
      // Predicated region
      $region9: #{tpu_custom_call.1} parent=5 // pred_check
        _
      $region10: #{tpu_custom_call.1} parent=5 // pred_check_branch
        %158 = sbr.rel (%p155) target = $region12
      $region11: #{tpu_custom_call.1} parent=5 // pred_region
        %s159 = ssub.s32 %s20, 1
        // Predicated region
        $region13: #{tpu_custom_call.1} parent=11 // pred_check
          %p160 = pneg %p93
        $region14: #{tpu_custom_call.1} parent=11 // pred_check_branch
          %162 = sbr.rel (%p160) target = $region16
        $region15: #{tpu_custom_call.1} parent=11 // pred_region
          %s164 = ssub.s32 1024, 1024
          %165 = vsyncadd [#allocation6], %s164
          %s166 = sshll.u32 [#allocation7], 4
          %s167 = int_to_ptr.vmem [resolvable:$true] %s166
          %172 = dma.hbm_to_vmem [thread:$0]  %s2, 1024, %s167, [#allocation6], 64, 64, 4
        $region16: #{tpu_custom_call.1} parent=11 // pred_fallthru
          _
      $region12: #{tpu_custom_call.1} parent=5 // pred_fallthru
        _
      %p173 = scmp.lt.s32.totalorder %s20, 2
      // Predicated region
      $region17: #{tpu_custom_call.1} parent=5 // pred_check
        %p174 = pneg %p173
      $region18: #{tpu_custom_call.1} parent=5 // pred_check_branch
        %176 = sbr.rel (%p174) target = $region20
      $region19: #{tpu_custom_call.1} parent=5 // pred_region
        // Predicated region
        $region21: #{tpu_custom_call.1} parent=19 // pred_check
          %p177 = pneg %p40
        $region22: #{tpu_custom_call.1} parent=19 // pred_check_branch
          %179 = sbr.rel (%p177) target = $region24
        $region23: #{tpu_custom_call.1} parent=19 // pred_region
          %s180 = sand.u32 %s30, 1
          %s181 = scalar_lea.sflag [#allocation3], %s180
          %s182 = sand.u32 %s30, 1
          %s183 = smul.addr %s182, 128
          %s184 = scalar_lea.vmem [#allocation2], %s183
          %s185 = smul.u32 2, %s20
          %s187 = ssub.s32 2048, 2048
          %188 = vsyncadd %s181, %s187
          %s189 = smul.addr %s185, 16
          %s190 = smul.addr %s189, 64
          %s191 = scalar_lea.hbm %s0, %s190
          %s192 = sshll.u32 %s184, 4
          %s193 = int_to_ptr.vmem [resolvable:$true] %s192
          %198 = dma.hbm_to_vmem [thread:$0]  %s191, 2048, %s193, %s181, 64, 64, 4
        $region24: #{tpu_custom_call.1} parent=19 // pred_fallthru
          _
        // Predicated region
        $region25: #{tpu_custom_call.1} parent=19 // pred_check
          %p199 = pneg %p66
        $region26: #{tpu_custom_call.1} parent=19 // pred_check_branch
          %201 = sbr.rel (%p199) target = $region28
        $region27: #{tpu_custom_call.1} parent=19 // pred_region
          %s202 = sand.u32 %s20, 1
          %s203 = scalar_lea.sflag [#allocation6], %s202
          %s204 = sand.u32 %s56, 1
          %s205 = smul.addr %s204, 128
          %s206 = scalar_lea.vmem [#allocation5], %s205
          %s207 = smul.u32 2, %s20
          %s209 = ssub.s32 2048, 2048
          %210 = vsyncadd %s203, %s209
          %s211 = smul.addr %s207, 16
          %s212 = smul.addr %s211, 64
          %s213 = scalar_lea.hbm %s1, %s212
          %s214 = sshll.u32 %s206, 4
          %s215 = int_to_ptr.vmem [resolvable:$true] %s214
          %220 = dma.hbm_to_vmem [thread:$0]  %s213, 2048, %s215, %s203, 64, 64, 4
        $region28: #{tpu_custom_call.1} parent=19 // pred_fallthru
          _
      $region20: #{tpu_custom_call.1} parent=5 // pred_fallthru
        _
      %p221 = scmp.le.s32.totalorder 1, %s20
      %p222 = scmp.lt.s32.totalorder %s20, 3
      %p223 = pnand %p221, %p222
      %p224 = pneg %p223
      // Predicated region
      $region29: #{tpu_custom_call.1} parent=5 // pred_check
        _
      $region30: #{tpu_custom_call.1} parent=5 // pred_check_branch
        %226 = sbr.rel (%p223) target = $region32
      $region31: #{tpu_custom_call.1} parent=5 // pred_region
        %s227 = ssub.s32 %s20, 1
        %s228 = sand.u32 %s33, 1
        %s229 = scalar_lea.sflag [#allocation3], %s228
        %s230 = sand.u32 %s33, 1
        %s231 = smul.addr %s230, 128
        %s232 = scalar_lea.vmem [#allocation2], %s231
        // Predicated region
        $region33: #{tpu_custom_call.1} parent=31 // pred_check
          %p233 = pneg %p46
        $region34: #{tpu_custom_call.1} parent=31 // pred_check_branch
          %235 = sbr.rel (%p233) target = $region36
        $region35: #{tpu_custom_call.1} parent=31 // pred_region
          %236 = dma.done %s229, 2048
        $region36: #{tpu_custom_call.1} parent=31 // pred_fallthru
          _
        %s237 = sand.u32 %s25, 1
        %s238 = scalar_lea.sflag [#allocation6], %s237
        %s239 = sand.u32 %s59, 1
        %s240 = smul.addr %s239, 128
        %s241 = scalar_lea.vmem [#allocation5], %s240
        // Predicated region
        $region37: #{tpu_custom_call.1} parent=31 // pred_check
          %p242 = pneg %p72
        $region38: #{tpu_custom_call.1} parent=31 // pred_check_branch
          %244 = sbr.rel (%p242) target = $region40
        $region39: #{tpu_custom_call.1} parent=31 // pred_region
          %245 = dma.done %s238, 2048
        $region40: #{tpu_custom_call.1} parent=31 // pred_fallthru
          _
        // Predicated region
        $region41: #{tpu_custom_call.1} parent=31 // pred_check
          %p246 = pneg %p93
        $region42: #{tpu_custom_call.1} parent=31 // pred_check_branch
          %248 = sbr.rel (%p246) target = $region44
        $region43: #{tpu_custom_call.1} parent=31 // pred_region
          %249 = dma.done [#allocation6], 1024
        $region44: #{tpu_custom_call.1} parent=31 // pred_fallthru
          _
        %s250 = sand.u32 %s33, 1
        %s251 = scalar_lea.sflag [#allocation3], %s250
        %s252 = sand.u32 %s33, 1
        %s253 = smul.addr %s252, 128
        %s254 = scalar_lea.vmem [#allocation2], %s253
        %p255 = pneg %p46
        %p256 = pneg %p43
        %s257 = sand.u32 %s25, 1
        %s258 = scalar_lea.sflag [#allocation6], %s257
        %s259 = sand.u32 %s59, 1
        %s260 = smul.addr %s259, 128
        %s261 = scalar_lea.vmem [#allocation5], %s260
        %p262 = pneg %p72
        %p263 = pneg %p69
        %p264 = pneg %p93
        %p265 = pneg %p90
        %p266 = pneg %p119
        %p267 = pneg %p116
        %s268 = sand.u32 %s106, 1
        %s269 = scalar_lea.sflag [#allocation4], %s268
        %s270 = sand.u32 %s106, 1
        %s271 = smul.addr %s270, 128
        %s272 = scalar_lea.vmem [#allocation8], %s271
        %p273 = pneg %p145
        %p274 = pneg %p142
        %p275 = scmp.lt.s32.totalorder %s25, 1
        %s276 = scalar_select %p275, %s25, 1
        %s277 = smul.addr %s276, 2
        %s278 = scalar_lea.vmem %s4, %s277
        %s279 = smul.u32 2, %s25
        %s280 = smul.u32 2, %s25
        %s281 = smul.u32 2, %s25
        %p282 = scmp.lt.s32.totalorder %s25, 1
        %s283 = scalar_select %p282, %s25, 1
        %s284 = smul.addr %s283, 2
        %s285 = scalar_lea.vmem %s4, %s284
        %v287 = vld [vmem:[%s241] sm:$0xf]
        %v288 = vld [vmem:[%s241 + $0x4] sm:$0xf]
        %v289 = vld [vmem:[%s241 + $0x8] sm:$0xf]
        %v290 = vld [vmem:[%s241 + $0xc] sm:$0xf]
        %v291 = vld [vmem:[%s241 + $0x10] sm:$0xf]
        %v292 = vld [vmem:[%s241 + $0x14] sm:$0xf]
        %v293 = vld [vmem:[%s241 + $0x18] sm:$0xf]
        %v294 = vld [vmem:[%s241 + $0x1c] sm:$0xf]
        %v295 = vld [vmem:[%s241 + $0x20] sm:$0xf]
        %v296 = vld [vmem:[%s241 + $0x24] sm:$0xf]
        %v297 = vld [vmem:[%s241 + $0x28] sm:$0xf]
        %v298 = vld [vmem:[%s241 + $0x2c] sm:$0xf]
        %v299 = vld [vmem:[%s241 + $0x30] sm:$0xf]
        %v300 = vld [vmem:[%s241 + $0x34] sm:$0xf]
        %v301 = vld [vmem:[%s241 + $0x38] sm:$0xf]
        %v302 = vld [vmem:[%s241 + $0x3c] sm:$0xf]
        %v303 = vld [vmem:[%s241 + $0x40] sm:$0xf]
        %v304 = vld [vmem:[%s241 + $0x44] sm:$0xf]
        %v305 = vld [vmem:[%s241 + $0x48] sm:$0xf]
        %v306 = vld [vmem:[%s241 + $0x4c] sm:$0xf]
        %v307 = vld [vmem:[%s241 + $0x50] sm:$0xf]
        %v308 = vld [vmem:[%s241 + $0x54] sm:$0xf]
        %v309 = vld [vmem:[%s241 + $0x58] sm:$0xf]
        %v310 = vld [vmem:[%s241 + $0x5c] sm:$0xf]
        %v311 = vld [vmem:[%s241 + $0x60] sm:$0xf]
        %v312 = vld [vmem:[%s241 + $0x64] sm:$0xf]
        %v313 = vld [vmem:[%s241 + $0x68] sm:$0xf]
        %v314 = vld [vmem:[%s241 + $0x6c] sm:$0xf]
        %v315 = vld [vmem:[%s241 + $0x70] sm:$0xf]
        %v316 = vld [vmem:[%s241 + $0x74] sm:$0xf]
        %v317 = vld [vmem:[%s241 + $0x78] sm:$0xf]
        %v318 = vld [vmem:[%s241 + $0x7c] sm:$0xf]
        %v319 = vld [vmem:[#allocation7] sm:$0xf]
        %v320 = vld [vmem:[#allocation7 + $0x4] sm:$0xf]
        %v321 = vld [vmem:[#allocation7 + $0x8] sm:$0xf]
        %v322 = vld [vmem:[#allocation7 + $0xc] sm:$0xf]
        %v323 = vld [vmem:[#allocation7 + $0x10] sm:$0xf]
        %v324 = vld [vmem:[#allocation7 + $0x14] sm:$0xf]
        %v325 = vld [vmem:[#allocation7 + $0x18] sm:$0xf]
        %v326 = vld [vmem:[#allocation7 + $0x1c] sm:$0xf]
        %v327 = vld [vmem:[#allocation7 + $0x20] sm:$0xf]
        %v328 = vld [vmem:[#allocation7 + $0x24] sm:$0xf]
        %v329 = vld [vmem:[#allocation7 + $0x28] sm:$0xf]
        %v330 = vld [vmem:[#allocation7 + $0x2c] sm:$0xf]
        %v331 = vld [vmem:[#allocation7 + $0x30] sm:$0xf]
        %v332 = vld [vmem:[#allocation7 + $0x34] sm:$0xf]
        %v333 = vld [vmem:[#allocation7 + $0x38] sm:$0xf]
        %v334 = vld [vmem:[#allocation7 + $0x3c] sm:$0xf]
        %v367 = vunpack.c.l.b16 %v287
        %v368 = vunpack.c.l.b16 %v288
        %v369 = vunpack.c.l.b16 %v289
        %v370 = vunpack.c.l.b16 %v290
        %v371 = vunpack.c.l.b16 %v291
        %v372 = vunpack.c.l.b16 %v292
        %v373 = vunpack.c.l.b16 %v293
        %v374 = vunpack.c.l.b16 %v294
        %v375 = vunpack.c.l.b16 %v295
        %v376 = vunpack.c.l.b16 %v296
        %v377 = vunpack.c.l.b16 %v297
        %v378 = vunpack.c.l.b16 %v298
        %v379 = vunpack.c.l.b16 %v299
        %v380 = vunpack.c.l.b16 %v300
        %v381 = vunpack.c.l.b16 %v301
        %v382 = vunpack.c.l.b16 %v302
        %v383 = vunpack.c.l.b16 %v303
        %v384 = vunpack.c.l.b16 %v304
        %v385 = vunpack.c.l.b16 %v305
        %v386 = vunpack.c.l.b16 %v306
        %v387 = vunpack.c.l.b16 %v307
        %v388 = vunpack.c.l.b16 %v308
        %v389 = vunpack.c.l.b16 %v309
        %v390 = vunpack.c.l.b16 %v310
        %v391 = vunpack.c.l.b16 %v311
        %v392 = vunpack.c.l.b16 %v312
        %v393 = vunpack.c.l.b16 %v313
        %v394 = vunpack.c.l.b16 %v314
        %v395 = vunpack.c.l.b16 %v315
        %v396 = vunpack.c.l.b16 %v316
        %v397 = vunpack.c.l.b16 %v317
        %v398 = vunpack.c.l.b16 %v318
        %v399 = vpack.c.b16 %v368, %v367
        %v400 = vpack.c.b16 %v370, %v369
        %v401 = vpack.c.b16 %v372, %v371
        %v402 = vpack.c.b16 %v374, %v373
        %v403 = vpack.c.b16 %v376, %v375
        %v404 = vpack.c.b16 %v378, %v377
        %v405 = vpack.c.b16 %v380, %v379
        %v406 = vpack.c.b16 %v382, %v381
        %v407 = vpack.c.b16 %v384, %v383
        %v408 = vpack.c.b16 %v386, %v385
        %v409 = vpack.c.b16 %v388, %v387
        %v410 = vpack.c.b16 %v390, %v389
        %v411 = vpack.c.b16 %v392, %v391
        %v412 = vpack.c.b16 %v394, %v393
        %v413 = vpack.c.b16 %v396, %v395
        %v414 = vpack.c.b16 %v398, %v397
        %v447 = vunpack.c.l.b16 %v319
        %v448 = vunpack.c.l.b16 %v320
        %v449 = vunpack.c.l.b16 %v321
        %v450 = vunpack.c.l.b16 %v322
        %v451 = vunpack.c.l.b16 %v323
        %v452 = vunpack.c.l.b16 %v324
        %v453 = vunpack.c.l.b16 %v325
        %v454 = vunpack.c.l.b16 %v326
        %v455 = vunpack.c.l.b16 %v327
        %v456 = vunpack.c.l.b16 %v328
        %v457 = vunpack.c.l.b16 %v329
        %v458 = vunpack.c.l.b16 %v330
        %v459 = vunpack.c.l.b16 %v331
        %v460 = vunpack.c.l.b16 %v332
        %v461 = vunpack.c.l.b16 %v333
        %v462 = vunpack.c.l.b16 %v334
        %v463 = vpack.c.b16 %v448, %v447
        %v464 = vpack.c.b16 %v450, %v449
        %v465 = vpack.c.b16 %v452, %v451
        %v466 = vpack.c.b16 %v454, %v453
        %v467 = vpack.c.b16 %v456, %v455
        %v468 = vpack.c.b16 %v458, %v457
        %v469 = vpack.c.b16 %v460, %v459
        %v470 = vpack.c.b16 %v462, %v461
        %479 = vmatprep.subr.bf16.mxu0 0
        %480 = vmatpush1.bf16.msra.mxu0 %v463
        %481 = vmatprep.subr.bf16.mxu0 0
        %482 = vmatpush1.bf16.msra.mxu0 %v464
        %483 = vmatprep.subr.bf16.mxu0 0
        %484 = vmatpush1.bf16.msra.mxu0 %v465
        %485 = vmatprep.subr.bf16.mxu0 0
        %486 = vmatpush1.bf16.msra.mxu0 %v466
        %487 = vmatprep.subr.bf16.mxu0 0
        %488 = vmatpush1.bf16.msra.mxu0 %v467
        %489 = vmatprep.subr.bf16.mxu0 0
        %490 = vmatpush1.bf16.msra.mxu0 %v468
        %491 = vmatprep.subr.bf16.mxu0 0
        %492 = vmatpush1.bf16.msra.mxu0 %v469
        %493 = vmatprep.subr.bf16.mxu0 0
        %494 = vmatpush1.bf16.msra.mxu0 %v470
        %495 = vmatprep.subr.bf16.mxu0 0
        %496 = vmatpush1.bf16.msra.mxu0 0
        %497 = vmatprep.subr.bf16.mxu0 0
        %498 = vmatpush1.bf16.msra.mxu0 0
        %499 = vmatprep.subr.bf16.mxu0 0
        %500 = vmatpush1.bf16.msra.mxu0 0
        %501 = vmatprep.subr.bf16.mxu0 0
        %502 = vmatpush1.bf16.msra.mxu0 0
        %503 = vmatprep.subr.bf16.mxu0 0
        %504 = vmatpush1.bf16.msra.mxu0 0
        %505 = vmatprep.subr.bf16.mxu0 0
        %506 = vmatpush1.bf16.msra.mxu0 0
        %507 = vmatprep.subr.bf16.mxu0 0
        %508 = vmatpush1.bf16.msra.mxu0 0
        %509 = vmatprep.subr.bf16.mxu0 0
        %510 = vmatpush1.bf16.msra.mxu0 0
        %511 = vmatprep.mubr.bf16.mxu0 0
        %512 = vmatmul.mubr.bf16.gmra.mrb[0].mxu0 %v399
        %v513 = vpop.f32.mrb[0].mxu0
        %v514 = vadd.f32 0.0, %v513
        %v515 = vpop.f32.mrb[0].mxu0
        %v516 = vpop.f32.mrb[0].mxu0
        %v517 = vadd.f32 0.0, %v516
        %v518 = vpop.f32.mrb[0].mxu0
        %519 = vmatprep.mubr.bf16.mxu0 0
        %520 = vmatmul.mubr.bf16.gmra.mrb[0].mxu0 %v400
        %v521 = vpop.f32.mrb[0].mxu0
        %v522 = vadd.f32 0.0, %v521
        %v523 = vpop.f32.mrb[0].mxu0
        %v524 = vpop.f32.mrb[0].mxu0
        %v525 = vadd.f32 0.0, %v524
        %v526 = vpop.f32.mrb[0].mxu0
        %527 = vmatprep.mubr.bf16.mxu0 0
        %528 = vmatmul.mubr.bf16.gmra.mrb[0].mxu0 %v401
        %v529 = vpop.f32.mrb[0].mxu0
        %v530 = vadd.f32 0.0, %v529
        %v531 = vpop.f32.mrb[0].mxu0
        %v532 = vpop.f32.mrb[0].mxu0
        %v533 = vadd.f32 0.0, %v532
        %v534 = vpop.f32.mrb[0].mxu0
        %535 = vmatprep.mubr.bf16.mxu0 0
        %536 = vmatmul.mubr.bf16.gmra.mrb[0].mxu0 %v402
        %v537 = vpop.f32.mrb[0].mxu0
        %v538 = vadd.f32 0.0, %v537
        %v539 = vpop.f32.mrb[0].mxu0
        %v540 = vpop.f32.mrb[0].mxu0
        %v541 = vadd.f32 0.0, %v540
        %v542 = vpop.f32.mrb[0].mxu0
        %543 = vmatprep.mubr.bf16.mxu0 0
        %544 = vmatmul.mubr.bf16.gmra.mrb[0].mxu0 %v403
        %v545 = vpop.f32.mrb[0].mxu0
        %v546 = vadd.f32 0.0, %v545
        %v547 = vpop.f32.mrb[0].mxu0
        %v548 = vpop.f32.mrb[0].mxu0
        %v549 = vadd.f32 0.0, %v548
        %v550 = vpop.f32.mrb[0].mxu0
        %551 = vmatprep.mubr.bf16.mxu0 0
        %552 = vmatmul.mubr.bf16.gmra.mrb[0].mxu0 %v404
        %v553 = vpop.f32.mrb[0].mxu0
        %v554 = vadd.f32 0.0, %v553
        %v555 = vpop.f32.mrb[0].mxu0
        %v556 = vpop.f32.mrb[0].mxu0
        %v557 = vadd.f32 0.0, %v556
        %v558 = vpop.f32.mrb[0].mxu0
        %559 = vmatprep.mubr.bf16.mxu0 0
        %560 = vmatmul.mubr.bf16.gmra.mrb[0].mxu0 %v405
        %v561 = vpop.f32.mrb[0].mxu0
        %v562 = vadd.f32 0.0, %v561
        %v563 = vpop.f32.mrb[0].mxu0
        %v564 = vpop.f32.mrb[0].mxu0
        %v565 = vadd.f32 0.0, %v564
        %v566 = vpop.f32.mrb[0].mxu0
        %567 = vmatprep.mubr.bf16.mxu0 0
        %568 = vmatmul.mubr.bf16.gmra.mrb[0].mxu0 %v406
        %v569 = vpop.f32.mrb[0].mxu0
        %v570 = vadd.f32 0.0, %v569
        %v571 = vpop.f32.mrb[0].mxu0
        %v572 = vpop.f32.mrb[0].mxu0
        %v573 = vadd.f32 0.0, %v572
        %v574 = vpop.f32.mrb[0].mxu0
        %575 = vmatprep.mubr.bf16.mxu0 0
        %576 = vmatmul.mubr.bf16.gmra.mrb[0].mxu0 %v407
        %v577 = vpop.f32.mrb[0].mxu0
        %v578 = vadd.f32 0.0, %v577
        %v579 = vpop.f32.mrb[0].mxu0
        %v580 = vpop.f32.mrb[0].mxu0
        %v581 = vadd.f32 0.0, %v580
        %v582 = vpop.f32.mrb[0].mxu0
        %583 = vmatprep.mubr.bf16.mxu0 0
        %584 = vmatmul.mubr.bf16.gmra.mrb[0].mxu0 %v408
        %v585 = vpop.f32.mrb[0].mxu0
        %v586 = vadd.f32 0.0, %v585
        %v587 = vpop.f32.mrb[0].mxu0
        %v588 = vpop.f32.mrb[0].mxu0
        %v589 = vadd.f32 0.0, %v588
        %v590 = vpop.f32.mrb[0].mxu0
        %591 = vmatprep.mubr.bf16.mxu0 0
        %592 = vmatmul.mubr.bf16.gmra.mrb[0].mxu0 %v409
        %v593 = vpop.f32.mrb[0].mxu0
        %v594 = vadd.f32 0.0, %v593
        %v595 = vpop.f32.mrb[0].mxu0
        %v596 = vpop.f32.mrb[0].mxu0
        %v597 = vadd.f32 0.0, %v596
        %v598 = vpop.f32.mrb[0].mxu0
        %599 = vmatprep.mubr.bf16.mxu0 0
        %600 = vmatmul.mubr.bf16.gmra.mrb[0].mxu0 %v410
        %v601 = vpop.f32.mrb[0].mxu0
        %v602 = vadd.f32 0.0, %v601
        %v603 = vpop.f32.mrb[0].mxu0
        %v604 = vpop.f32.mrb[0].mxu0
        %v605 = vadd.f32 0.0, %v604
        %v606 = vpop.f32.mrb[0].mxu0
        %607 = vmatprep.mubr.bf16.mxu0 0
        %608 = vmatmul.mubr.bf16.gmra.mrb[0].mxu0 %v411
        %v609 = vpop.f32.mrb[0].mxu0
        %v610 = vadd.f32 0.0, %v609
        %v611 = vpop.f32.mrb[0].mxu0
        %v612 = vpop.f32.mrb[0].mxu0
        %v613 = vadd.f32 0.0, %v612
        %v614 = vpop.f32.mrb[0].mxu0
        %615 = vmatprep.mubr.bf16.mxu0 0
        %616 = vmatmul.mubr.bf16.gmra.mrb[0].mxu0 %v412
        %v617 = vpop.f32.mrb[0].mxu0
        %v618 = vadd.f32 0.0, %v617
        %v619 = vpop.f32.mrb[0].mxu0
        %v620 = vpop.f32.mrb[0].mxu0
        %v621 = vadd.f32 0.0, %v620
        %v622 = vpop.f32.mrb[0].mxu0
        %623 = vmatprep.mubr.bf16.mxu0 0
        %624 = vmatmul.mubr.bf16.gmra.mrb[0].mxu0 %v413
        %v625 = vpop.f32.mrb[0].mxu0
        %v626 = vadd.f32 0.0, %v625
        %v627 = vpop.f32.mrb[0].mxu0
        %v628 = vpop.f32.mrb[0].mxu0
        %v629 = vadd.f32 0.0, %v628
        %v630 = vpop.f32.mrb[0].mxu0
        %631 = vmatprep.mubr.bf16.mxu0 0
        %632 = vmatmul.mubr.bf16.gmra.mrb[0].mxu0 %v414
        %v633 = vpop.f32.mrb[0].mxu0
        %v634 = vadd.f32 0.0, %v633
        %v635 = vpop.f32.mrb[0].mxu0
        %v636 = vpop.f32.mrb[0].mxu0
        %v637 = vadd.f32 0.0, %v636
        %v638 = vpop.f32.mrb[0].mxu0
        %639 = vdwg.mxu0
        %v640 = vld [vmem:[%s232] sm:$0xf]
        %v641 = vld [vmem:[%s232 + $0x4] sm:$0xf]
        %v642 = vld [vmem:[%s232 + $0x8] sm:$0xf]
        %v643 = vld [vmem:[%s232 + $0xc] sm:$0xf]
        %v644 = vld [vmem:[%s232 + $0x10] sm:$0xf]
        %v645 = vld [vmem:[%s232 + $0x14] sm:$0xf]
        %v646 = vld [vmem:[%s232 + $0x18] sm:$0xf]
        %v647 = vld [vmem:[%s232 + $0x1c] sm:$0xf]
        %v648 = vld [vmem:[%s232 + $0x20] sm:$0xf]
        %v649 = vld [vmem:[%s232 + $0x24] sm:$0xf]
        %v650 = vld [vmem:[%s232 + $0x28] sm:$0xf]
        %v651 = vld [vmem:[%s232 + $0x2c] sm:$0xf]
        %v652 = vld [vmem:[%s232 + $0x30] sm:$0xf]
        %v653 = vld [vmem:[%s232 + $0x34] sm:$0xf]
        %v654 = vld [vmem:[%s232 + $0x38] sm:$0xf]
        %v655 = vld [vmem:[%s232 + $0x3c] sm:$0xf]
        %v656 = vld [vmem:[%s232 + $0x40] sm:$0xf]
        %v657 = vld [vmem:[%s232 + $0x44] sm:$0xf]
        %v658 = vld [vmem:[%s232 + $0x48] sm:$0xf]
        %v659 = vld [vmem:[%s232 + $0x4c] sm:$0xf]
        %v660 = vld [vmem:[%s232 + $0x50] sm:$0xf]
        %v661 = vld [vmem:[%s232 + $0x54] sm:$0xf]
        %v662 = vld [vmem:[%s232 + $0x58] sm:$0xf]
        %v663 = vld [vmem:[%s232 + $0x5c] sm:$0xf]
        %v664 = vld [vmem:[%s232 + $0x60] sm:$0xf]
        %v665 = vld [vmem:[%s232 + $0x64] sm:$0xf]
        %v666 = vld [vmem:[%s232 + $0x68] sm:$0xf]
        %v667 = vld [vmem:[%s232 + $0x6c] sm:$0xf]
        %v668 = vld [vmem:[%s232 + $0x70] sm:$0xf]
        %v669 = vld [vmem:[%s232 + $0x74] sm:$0xf]
        %v670 = vld [vmem:[%s232 + $0x78] sm:$0xf]
        %v671 = vld [vmem:[%s232 + $0x7c] sm:$0xf]
        %v672 = vpack.c.bf16 %v517, %v514
        %v673 = vpack.c.bf16 %v525, %v522
        %v674 = vpack.c.bf16 %v533, %v530
        %v675 = vpack.c.bf16 %v541, %v538
        %v676 = vpack.c.bf16 %v549, %v546
        %v677 = vpack.c.bf16 %v557, %v554
        %v678 = vpack.c.bf16 %v565, %v562
        %v679 = vpack.c.bf16 %v573, %v570
        %v680 = vpack.c.bf16 %v581, %v578
        %v681 = vpack.c.bf16 %v589, %v586
        %v682 = vpack.c.bf16 %v597, %v594
        %v683 = vpack.c.bf16 %v605, %v602
        %v684 = vpack.c.bf16 %v613, %v610
        %v685 = vpack.c.bf16 %v621, %v618
        %v686 = vpack.c.bf16 %v629, %v626
        %v687 = vpack.c.bf16 %v637, %v634
        %v704 = vunpack.c.l.b16 %v640
        %v705 = vunpack.c.l.b16 %v641
        %v706 = vunpack.c.l.b16 %v642
        %v707 = vunpack.c.l.b16 %v643
        %v708 = vunpack.c.l.b16 %v644
        %v709 = vunpack.c.l.b16 %v645
        %v710 = vunpack.c.l.b16 %v646
        %v711 = vunpack.c.l.b16 %v647
        %v712 = vunpack.c.l.b16 %v648
        %v713 = vunpack.c.l.b16 %v649
        %v714 = vunpack.c.l.b16 %v650
        %v715 = vunpack.c.l.b16 %v651
        %v716 = vunpack.c.l.b16 %v652
        %v717 = vunpack.c.l.b16 %v653
        %v718 = vunpack.c.l.b16 %v654
        %v719 = vunpack.c.l.b16 %v655
        %v720 = vpack.c.b16 %v705, %v704
        %v721 = vpack.c.b16 %v707, %v706
        %v722 = vpack.c.b16 %v709, %v708
        %v723 = vpack.c.b16 %v711, %v710
        %v724 = vpack.c.b16 %v713, %v712
        %v725 = vpack.c.b16 %v715, %v714
        %v726 = vpack.c.b16 %v717, %v716
        %v727 = vpack.c.b16 %v719, %v718
        %736 = vmatprep.subr.bf16.mxu0 0
        %737 = vmatpush1.bf16.msra.mxu0 %v672
        %738 = vmatprep.subr.bf16.mxu0 0
        %739 = vmatpush1.bf16.msra.mxu0 %v673
        %740 = vmatprep.subr.bf16.mxu0 0
        %741 = vmatpush1.bf16.msra.mxu0 %v674
        %742 = vmatprep.subr.bf16.mxu0 0
        %743 = vmatpush1.bf16.msra.mxu0 %v675
        %744 = vmatprep.subr.bf16.mxu0 0
        %745 = vmatpush1.bf16.msra.mxu0 %v676
        %746 = vmatprep.subr.bf16.mxu0 0
        %747 = vmatpush1.bf16.msra.mxu0 %v677
        %748 = vmatprep.subr.bf16.mxu0 0
        %749 = vmatpush1.bf16.msra.mxu0 %v678
        %750 = vmatprep.subr.bf16.mxu0 0
        %751 = vmatpush1.bf16.msra.mxu0 %v679
        %752 = vmatprep.subr.bf16.mxu0 0
        %753 = vmatpush1.bf16.msra.mxu0 0
        %754 = vmatprep.subr.bf16.mxu0 0
        %755 = vmatpush1.bf16.msra.mxu0 0
        %756 = vmatprep.subr.bf16.mxu0 0
        %757 = vmatpush1.bf16.msra.mxu0 0
        %758 = vmatprep.subr.bf16.mxu0 0
        %759 = vmatpush1.bf16.msra.mxu0 0
        %760 = vmatprep.subr.bf16.mxu0 0
        %761 = vmatpush1.bf16.msra.mxu0 0
        %762 = vmatprep.subr.bf16.mxu0 0
        %763 = vmatpush1.bf16.msra.mxu0 0
        %764 = vmatprep.subr.bf16.mxu0 0
        %765 = vmatpush1.bf16.msra.mxu0 0
        %766 = vmatprep.subr.bf16.mxu0 0
        %767 = vmatpush1.bf16.msra.mxu0 0
        %768 = vmatprep.mubr.bf16.mxu0 0
        %769 = vmatmul.mubr.bf16.gmra.mrb[0].mxu0 %v720
        %v770 = vpop.f32.mrb[0].mxu0
        %v771 = vadd.f32 0.0, %v770
        %v772 = vpop.f32.mrb[0].mxu0
        %v773 = vpop.f32.mrb[0].mxu0
        %v774 = vadd.f32 0.0, %v773
        %v775 = vpop.f32.mrb[0].mxu0
        %776 = vmatprep.mubr.bf16.mxu0 0
        %777 = vmatmul.mubr.bf16.gmra.mrb[0].mxu0 %v721
        %v778 = vpop.f32.mrb[0].mxu0
        %v779 = vadd.f32 0.0, %v778
        %v780 = vpop.f32.mrb[0].mxu0
        %v781 = vpop.f32.mrb[0].mxu0
        %v782 = vadd.f32 0.0, %v781
        %v783 = vpop.f32.mrb[0].mxu0
        %784 = vmatprep.mubr.bf16.mxu0 0
        %785 = vmatmul.mubr.bf16.gmra.mrb[0].mxu0 %v722
        %v786 = vpop.f32.mrb[0].mxu0
        %v787 = vadd.f32 0.0, %v786
        %v788 = vpop.f32.mrb[0].mxu0
        %v789 = vpop.f32.mrb[0].mxu0
        %v790 = vadd.f32 0.0, %v789
        %v791 = vpop.f32.mrb[0].mxu0
        %792 = vmatprep.mubr.bf16.mxu0 0
        %793 = vmatmul.mubr.bf16.gmra.mrb[0].mxu0 %v723
        %v794 = vpop.f32.mrb[0].mxu0
        %v795 = vadd.f32 0.0, %v794
        %v796 = vpop.f32.mrb[0].mxu0
        %v797 = vpop.f32.mrb[0].mxu0
        %v798 = vadd.f32 0.0, %v797
        %v799 = vpop.f32.mrb[0].mxu0
        %800 = vmatprep.mubr.bf16.mxu0 0
        %801 = vmatmul.mubr.bf16.gmra.mrb[0].mxu0 %v724
        %v802 = vpop.f32.mrb[0].mxu0
        %v803 = vadd.f32 0.0, %v802
        %v804 = vpop.f32.mrb[0].mxu0
        %v805 = vpop.f32.mrb[0].mxu0
        %v806 = vadd.f32 0.0, %v805
        %v807 = vpop.f32.mrb[0].mxu0
        %808 = vmatprep.mubr.bf16.mxu0 0
        %809 = vmatmul.mubr.bf16.gmra.mrb[0].mxu0 %v725
        %v810 = vpop.f32.mrb[0].mxu0
        %v811 = vadd.f32 0.0, %v810
        %v812 = vpop.f32.mrb[0].mxu0
        %v813 = vpop.f32.mrb[0].mxu0
        %v814 = vadd.f32 0.0, %v813
        %v815 = vpop.f32.mrb[0].mxu0
        %816 = vmatprep.mubr.bf16.mxu0 0
        %817 = vmatmul.mubr.bf16.gmra.mrb[0].mxu0 %v726
        %v818 = vpop.f32.mrb[0].mxu0
        %v819 = vadd.f32 0.0, %v818
        %v820 = vpop.f32.mrb[0].mxu0
        %v821 = vpop.f32.mrb[0].mxu0
        %v822 = vadd.f32 0.0, %v821
        %v823 = vpop.f32.mrb[0].mxu0
        %824 = vmatprep.mubr.bf16.mxu0 0
        %825 = vmatmul.mubr.bf16.gmra.mrb[0].mxu0 %v727
        %v826 = vpop.f32.mrb[0].mxu0
        %v827 = vadd.f32 0.0, %v826
        %v828 = vpop.f32.mrb[0].mxu0
        %v829 = vpop.f32.mrb[0].mxu0
        %v830 = vadd.f32 0.0, %v829
        %v831 = vpop.f32.mrb[0].mxu0
        %832 = vdwg.mxu0
        %v849 = vunpack.c.l.b16 %v656
        %v850 = vunpack.c.l.b16 %v657
        %v851 = vunpack.c.l.b16 %v658
        %v852 = vunpack.c.l.b16 %v659
        %v853 = vunpack.c.l.b16 %v660
        %v854 = vunpack.c.l.b16 %v661
        %v855 = vunpack.c.l.b16 %v662
        %v856 = vunpack.c.l.b16 %v663
        %v857 = vunpack.c.l.b16 %v664
        %v858 = vunpack.c.l.b16 %v665
        %v859 = vunpack.c.l.b16 %v666
        %v860 = vunpack.c.l.b16 %v667
        %v861 = vunpack.c.l.b16 %v668
        %v862 = vunpack.c.l.b16 %v669
        %v863 = vunpack.c.l.b16 %v670
        %v864 = vunpack.c.l.b16 %v671
        %v865 = vpack.c.b16 %v850, %v849
        %v866 = vpack.c.b16 %v852, %v851
        %v867 = vpack.c.b16 %v854, %v853
        %v868 = vpack.c.b16 %v856, %v855
        %v869 = vpack.c.b16 %v858, %v857
        %v870 = vpack.c.b16 %v860, %v859
        %v871 = vpack.c.b16 %v862, %v861
        %v872 = vpack.c.b16 %v864, %v863
        %881 = vmatprep.subr.bf16.mxu0 0
        %882 = vmatpush1.bf16.msra.mxu0 %v680
        %883 = vmatprep.subr.bf16.mxu0 0
        %884 = vmatpush1.bf16.msra.mxu0 %v681
        %885 = vmatprep.subr.bf16.mxu0 0
        %886 = vmatpush1.bf16.msra.mxu0 %v682
        %887 = vmatprep.subr.bf16.mxu0 0
        %888 = vmatpush1.bf16.msra.mxu0 %v683
        %889 = vmatprep.subr.bf16.mxu0 0
        %890 = vmatpush1.bf16.msra.mxu0 %v684
        %891 = vmatprep.subr.bf16.mxu0 0
        %892 = vmatpush1.bf16.msra.mxu0 %v685
        %893 = vmatprep.subr.bf16.mxu0 0
        %894 = vmatpush1.bf16.msra.mxu0 %v686
        %895 = vmatprep.subr.bf16.mxu0 0
        %896 = vmatpush1.bf16.msra.mxu0 %v687
        %897 = vmatprep.subr.bf16.mxu0 0
        %898 = vmatpush1.bf16.msra.mxu0 0
        %899 = vmatprep.subr.bf16.mxu0 0
        %900 = vmatpush1.bf16.msra.mxu0 0
        %901 = vmatprep.subr.bf16.mxu0 0
        %902 = vmatpush1.bf16.msra.mxu0 0
        %903 = vmatprep.subr.bf16.mxu0 0
        %904 = vmatpush1.bf16.msra.mxu0 0
        %905 = vmatprep.subr.bf16.mxu0 0
        %906 = vmatpush1.bf16.msra.mxu0 0
        %907 = vmatprep.subr.bf16.mxu0 0
        %908 = vmatpush1.bf16.msra.mxu0 0
        %909 = vmatprep.subr.bf16.mxu0 0
        %910 = vmatpush1.bf16.msra.mxu0 0
        %911 = vmatprep.subr.bf16.mxu0 0
        %912 = vmatpush1.bf16.msra.mxu0 0
        %913 = vmatprep.mubr.bf16.mxu0 0
        %914 = vmatmul.mubr.bf16.gmra.mrb[0].mxu0 %v865
        %v915 = vpop.f32.mrb[0].mxu0
        %v916 = vadd.f32 0.0, %v915
        %v917 = vpop.f32.mrb[0].mxu0
        %v918 = vpop.f32.mrb[0].mxu0
        %v919 = vadd.f32 0.0, %v918
        %v920 = vpop.f32.mrb[0].mxu0
        %921 = vmatprep.mubr.bf16.mxu0 0
        %922 = vmatmul.mubr.bf16.gmra.mrb[0].mxu0 %v866
        %v923 = vpop.f32.mrb[0].mxu0
        %v924 = vadd.f32 0.0, %v923
        %v925 = vpop.f32.mrb[0].mxu0
        %v926 = vpop.f32.mrb[0].mxu0
        %v927 = vadd.f32 0.0, %v926
        %v928 = vpop.f32.mrb[0].mxu0
        %929 = vmatprep.mubr.bf16.mxu0 0
        %930 = vmatmul.mubr.bf16.gmra.mrb[0].mxu0 %v867
        %v931 = vpop.f32.mrb[0].mxu0
        %v932 = vadd.f32 0.0, %v931
        %v933 = vpop.f32.mrb[0].mxu0
        %v934 = vpop.f32.mrb[0].mxu0
        %v935 = vadd.f32 0.0, %v934
        %v936 = vpop.f32.mrb[0].mxu0
        %937 = vmatprep.mubr.bf16.mxu0 0
        %938 = vmatmul.mubr.bf16.gmra.mrb[0].mxu0 %v868
        %v939 = vpop.f32.mrb[0].mxu0
        %v940 = vadd.f32 0.0, %v939
        %v941 = vpop.f32.mrb[0].mxu0
        %v942 = vpop.f32.mrb[0].mxu0
        %v943 = vadd.f32 0.0, %v942
        %v944 = vpop.f32.mrb[0].mxu0
        %945 = vmatprep.mubr.bf16.mxu0 0
        %946 = vmatmul.mubr.bf16.gmra.mrb[0].mxu0 %v869
        %v947 = vpop.f32.mrb[0].mxu0
        %v948 = vadd.f32 0.0, %v947
        %v949 = vpop.f32.mrb[0].mxu0
        %v950 = vpop.f32.mrb[0].mxu0
        %v951 = vadd.f32 0.0, %v950
        %v952 = vpop.f32.mrb[0].mxu0
        %953 = vmatprep.mubr.bf16.mxu0 0
        %954 = vmatmul.mubr.bf16.gmra.mrb[0].mxu0 %v870
        %v955 = vpop.f32.mrb[0].mxu0
        %v956 = vadd.f32 0.0, %v955
        %v957 = vpop.f32.mrb[0].mxu0
        %v958 = vpop.f32.mrb[0].mxu0
        %v959 = vadd.f32 0.0, %v958
        %v960 = vpop.f32.mrb[0].mxu0
        %961 = vmatprep.mubr.bf16.mxu0 0
        %962 = vmatmul.mubr.bf16.gmra.mrb[0].mxu0 %v871
        %v963 = vpop.f32.mrb[0].mxu0
        %v964 = vadd.f32 0.0, %v963
        %v965 = vpop.f32.mrb[0].mxu0
        %v966 = vpop.f32.mrb[0].mxu0
        %v967 = vadd.f32 0.0, %v966
        %v968 = vpop.f32.mrb[0].mxu0
        %969 = vmatprep.mubr.bf16.mxu0 0
        %970 = vmatmul.mubr.bf16.gmra.mrb[0].mxu0 %v872
        %v971 = vpop.f32.mrb[0].mxu0
        %v972 = vadd.f32 0.0, %v971
        %v973 = vpop.f32.mrb[0].mxu0
        %v974 = vpop.f32.mrb[0].mxu0
        %v975 = vadd.f32 0.0, %v974
        %v976 = vpop.f32.mrb[0].mxu0
        %977 = vdwg.mxu0
        %v978 = vpack.c.bf16 %v774, %v771
        %v979 = vpack.c.bf16 %v782, %v779
        %v980 = vpack.c.bf16 %v790, %v787
        %v981 = vpack.c.bf16 %v798, %v795
        %v982 = vpack.c.bf16 %v806, %v803
        %v983 = vpack.c.bf16 %v814, %v811
        %v984 = vpack.c.bf16 %v822, %v819
        %v985 = vpack.c.bf16 %v830, %v827
        %v986 = vpack.c.bf16 %v919, %v916
        %v987 = vpack.c.bf16 %v927, %v924
        %v988 = vpack.c.bf16 %v935, %v932
        %v989 = vpack.c.bf16 %v943, %v940
        %v990 = vpack.c.bf16 %v951, %v948
        %v991 = vpack.c.bf16 %v959, %v956
        %v992 = vpack.c.bf16 %v967, %v964
        %v993 = vpack.c.bf16 %v975, %v972
        %v1010 = vunpack.c.l.b16 %v978
        %v1011 = vunpack.c.h.b16 %v978
        %v1012 = vunpack.c.l.b16 %v979
        %v1013 = vunpack.c.h.b16 %v979
        %v1014 = vunpack.c.l.b16 %v980
        %v1015 = vunpack.c.h.b16 %v980
        %v1016 = vunpack.c.l.b16 %v981
        %v1017 = vunpack.c.h.b16 %v981
        %v1018 = vunpack.c.l.b16 %v982
        %v1019 = vunpack.c.h.b16 %v982
        %v1020 = vunpack.c.l.b16 %v983
        %v1021 = vunpack.c.h.b16 %v983
        %v1022 = vunpack.c.l.b16 %v984
        %v1023 = vunpack.c.h.b16 %v984
        %v1024 = vunpack.c.l.b16 %v985
        %v1025 = vunpack.c.h.b16 %v985
        %v1026 = vunpack.c.l.b16 %v986
        %v1027 = vunpack.c.h.b16 %v986
        %v1028 = vunpack.c.l.b16 %v987
        %v1029 = vunpack.c.h.b16 %v987
        %v1030 = vunpack.c.l.b16 %v988
        %v1031 = vunpack.c.h.b16 %v988
        %v1032 = vunpack.c.l.b16 %v989
        %v1033 = vunpack.c.h.b16 %v989
        %v1034 = vunpack.c.l.b16 %v990
        %v1035 = vunpack.c.h.b16 %v990
        %v1036 = vunpack.c.l.b16 %v991
        %v1037 = vunpack.c.h.b16 %v991
        %v1038 = vunpack.c.l.b16 %v992
        %v1039 = vunpack.c.h.b16 %v992
        %v1040 = vunpack.c.l.b16 %v993
        %v1041 = vunpack.c.h.b16 %v993
        %v1042 = vpack.c.b16 %v1010, %v1010
        %v1043 = vpack.c.b16 %v1011, %v1011
        %v1044 = vpack.c.b16 %v1012, %v1012
        %v1045 = vpack.c.b16 %v1013, %v1013
        %v1046 = vpack.c.b16 %v1014, %v1014
        %v1047 = vpack.c.b16 %v1015, %v1015
        %v1048 = vpack.c.b16 %v1016, %v1016
        %v1049 = vpack.c.b16 %v1017, %v1017
        %v1050 = vpack.c.b16 %v1018, %v1018
        %v1051 = vpack.c.b16 %v1019, %v1019
        %v1052 = vpack.c.b16 %v1020, %v1020
        %v1053 = vpack.c.b16 %v1021, %v1021
        %v1054 = vpack.c.b16 %v1022, %v1022
        %v1055 = vpack.c.b16 %v1023, %v1023
        %v1056 = vpack.c.b16 %v1024, %v1024
        %v1057 = vpack.c.b16 %v1025, %v1025
        %v1058 = vpack.c.b16 %v1026, %v1026
        %v1059 = vpack.c.b16 %v1027, %v1027
        %v1060 = vpack.c.b16 %v1028, %v1028
        %v1061 = vpack.c.b16 %v1029, %v1029
        %v1062 = vpack.c.b16 %v1030, %v1030
        %v1063 = vpack.c.b16 %v1031, %v1031
        %v1064 = vpack.c.b16 %v1032, %v1032
        %v1065 = vpack.c.b16 %v1033, %v1033
        %v1066 = vpack.c.b16 %v1034, %v1034
        %v1067 = vpack.c.b16 %v1035, %v1035
        %v1068 = vpack.c.b16 %v1036, %v1036
        %v1069 = vpack.c.b16 %v1037, %v1037
        %v1070 = vpack.c.b16 %v1038, %v1038
        %v1071 = vpack.c.b16 %v1039, %v1039
        %v1072 = vpack.c.b16 %v1040, %v1040
        %v1073 = vpack.c.b16 %v1041, %v1041
        %1106 = vst [vmem:[%s272] sm:$0xf] %v1042
        %1107 = vst [vmem:[%s272 + $0x4] sm:$0xf] %v1043
        %1108 = vst [vmem:[%s272 + $0x8] sm:$0xf] %v1044
        %1109 = vst [vmem:[%s272 + $0xc] sm:$0xf] %v1045
        %1110 = vst [vmem:[%s272 + $0x10] sm:$0xf] %v1046
        %1111 = vst [vmem:[%s272 + $0x14] sm:$0xf] %v1047
        %1112 = vst [vmem:[%s272 + $0x18] sm:$0xf] %v1048
        %1113 = vst [vmem:[%s272 + $0x1c] sm:$0xf] %v1049
        %1114 = vst [vmem:[%s272 + $0x20] sm:$0xf] %v1050
        %1115 = vst [vmem:[%s272 + $0x24] sm:$0xf] %v1051
        %1116 = vst [vmem:[%s272 + $0x28] sm:$0xf] %v1052
        %1117 = vst [vmem:[%s272 + $0x2c] sm:$0xf] %v1053
        %1118 = vst [vmem:[%s272 + $0x30] sm:$0xf] %v1054
        %1119 = vst [vmem:[%s272 + $0x34] sm:$0xf] %v1055
        %1120 = vst [vmem:[%s272 + $0x38] sm:$0xf] %v1056
        %1121 = vst [vmem:[%s272 + $0x3c] sm:$0xf] %v1057
        %1122 = vst [vmem:[%s272 + $0x40] sm:$0xf] %v1058
        %1123 = vst [vmem:[%s272 + $0x44] sm:$0xf] %v1059
        %1124 = vst [vmem:[%s272 + $0x48] sm:$0xf] %v1060
        %1125 = vst [vmem:[%s272 + $0x4c] sm:$0xf] %v1061
        %1126 = vst [vmem:[%s272 + $0x50] sm:$0xf] %v1062
        %1127 = vst [vmem:[%s272 + $0x54] sm:$0xf] %v1063
        %1128 = vst [vmem:[%s272 + $0x58] sm:$0xf] %v1064
        %1129 = vst [vmem:[%s272 + $0x5c] sm:$0xf] %v1065
        %1130 = vst [vmem:[%s272 + $0x60] sm:$0xf] %v1066
        %1131 = vst [vmem:[%s272 + $0x64] sm:$0xf] %v1067
        %1132 = vst [vmem:[%s272 + $0x68] sm:$0xf] %v1068
        %1133 = vst [vmem:[%s272 + $0x6c] sm:$0xf] %v1069
        %1134 = vst [vmem:[%s272 + $0x70] sm:$0xf] %v1070
        %1135 = vst [vmem:[%s272 + $0x74] sm:$0xf] %v1071
        %1136 = vst [vmem:[%s272 + $0x78] sm:$0xf] %v1072
        %1137 = vst [vmem:[%s272 + $0x7c] sm:$0xf] %v1073
        %v1138 = vlaneseq
        %v1139 = vand.u32 %v1138, 127
        %vm1140 = vcmp.eq.s32.totalorder %v1139, 0
        %v1141 = vsel %vm1140, 1, 0
        %v1142 = vcvt.s32.f32 %v1141
        %v1143 = vmul.f32 %v771, %v771
        %v1144 = vmul.f32 %v774, %v774
        %v1145 = vmul.f32 %v779, %v779
        %v1146 = vmul.f32 %v782, %v782
        %v1147 = vmul.f32 %v787, %v787
        %v1148 = vmul.f32 %v790, %v790
        %v1149 = vmul.f32 %v795, %v795
        %v1150 = vmul.f32 %v798, %v798
        %v1151 = vmul.f32 %v803, %v803
        %v1152 = vmul.f32 %v806, %v806
        %v1153 = vmul.f32 %v811, %v811
        %v1154 = vmul.f32 %v814, %v814
        %v1155 = vmul.f32 %v819, %v819
        %v1156 = vmul.f32 %v822, %v822
        %v1157 = vmul.f32 %v827, %v827
        %v1158 = vmul.f32 %v830, %v830
        %v1159 = vmul.f32 %v916, %v916
        %v1160 = vmul.f32 %v919, %v919
        %v1161 = vmul.f32 %v924, %v924
        %v1162 = vmul.f32 %v927, %v927
        %v1163 = vmul.f32 %v932, %v932
        %v1164 = vmul.f32 %v935, %v935
        %v1165 = vmul.f32 %v940, %v940
        %v1166 = vmul.f32 %v943, %v943
        %v1167 = vmul.f32 %v948, %v948
        %v1168 = vmul.f32 %v951, %v951
        %v1169 = vmul.f32 %v956, %v956
        %v1170 = vmul.f32 %v959, %v959
        %v1171 = vmul.f32 %v964, %v964
        %v1172 = vmul.f32 %v967, %v967
        %v1173 = vmul.f32 %v972, %v972
        %v1174 = vmul.f32 %v975, %v975
        %v1175 = vmul.f32 %v1143, %v1142
        %v1176 = vmul.f32 %v1144, %v1142
        %v1177 = vmul.f32 %v1145, %v1142
        %v1178 = vmul.f32 %v1146, %v1142
        %v1179 = vmul.f32 %v1147, %v1142
        %v1180 = vmul.f32 %v1148, %v1142
        %v1181 = vmul.f32 %v1149, %v1142
        %v1182 = vmul.f32 %v1150, %v1142
        %v1183 = vmul.f32 %v1151, %v1142
        %v1184 = vmul.f32 %v1152, %v1142
        %v1185 = vmul.f32 %v1153, %v1142
        %v1186 = vmul.f32 %v1154, %v1142
        %v1187 = vmul.f32 %v1155, %v1142
        %v1188 = vmul.f32 %v1156, %v1142
        %v1189 = vmul.f32 %v1157, %v1142
        %v1190 = vmul.f32 %v1158, %v1142
        %v1191 = vmul.f32 %v1159, %v1142
        %v1192 = vmul.f32 %v1160, %v1142
        %v1193 = vmul.f32 %v1161, %v1142
        %v1194 = vmul.f32 %v1162, %v1142
        %v1195 = vmul.f32 %v1163, %v1142
        %v1196 = vmul.f32 %v1164, %v1142
        %v1197 = vmul.f32 %v1165, %v1142
        %v1198 = vmul.f32 %v1166, %v1142
        %v1199 = vmul.f32 %v1167, %v1142
        %v1200 = vmul.f32 %v1168, %v1142
        %v1201 = vmul.f32 %v1169, %v1142
        %v1202 = vmul.f32 %v1170, %v1142
        %v1203 = vmul.f32 %v1171, %v1142
        %v1204 = vmul.f32 %v1172, %v1142
        %v1205 = vmul.f32 %v1173, %v1142
        %v1206 = vmul.f32 %v1174, %v1142
        %1207 = vadd.xlane.f32.xlu0 %v1175
        %v1208 = vpop.xlane.xlu0 %1207
        %1209 = vadd.xlane.f32.xlu0 %v1176
        %v1210 = vpop.xlane.xlu0 %1209
        %1211 = vadd.xlane.f32.xlu0 %v1177
        %v1212 = vpop.xlane.xlu0 %1211
        %1213 = vadd.xlane.f32.xlu0 %v1178
        %v1214 = vpop.xlane.xlu0 %1213
        %1215 = vadd.xlane.f32.xlu0 %v1179
        %v1216 = vpop.xlane.xlu0 %1215
        %1217 = vadd.xlane.f32.xlu0 %v1180
        %v1218 = vpop.xlane.xlu0 %1217
        %1219 = vadd.xlane.f32.xlu0 %v1181
        %v1220 = vpop.xlane.xlu0 %1219
        %1221 = vadd.xlane.f32.xlu0 %v1182
        %v1222 = vpop.xlane.xlu0 %1221
        %1223 = vadd.xlane.f32.xlu0 %v1183
        %v1224 = vpop.xlane.xlu0 %1223
        %1225 = vadd.xlane.f32.xlu0 %v1184
        %v1226 = vpop.xlane.xlu0 %1225
        %1227 = vadd.xlane.f32.xlu0 %v1185
        %v1228 = vpop.xlane.xlu0 %1227
        %1229 = vadd.xlane.f32.xlu0 %v1186
        %v1230 = vpop.xlane.xlu0 %1229
        %1231 = vadd.xlane.f32.xlu0 %v1187
        %v1232 = vpop.xlane.xlu0 %1231
        %1233 = vadd.xlane.f32.xlu0 %v1188
        %v1234 = vpop.xlane.xlu0 %1233
        %1235 = vadd.xlane.f32.xlu0 %v1189
        %v1236 = vpop.xlane.xlu0 %1235
        %1237 = vadd.xlane.f32.xlu0 %v1190
        %v1238 = vpop.xlane.xlu0 %1237
        %1239 = vadd.xlane.f32.xlu0 %v1191
        %v1240 = vpop.xlane.xlu0 %1239
        %1241 = vadd.xlane.f32.xlu0 %v1192
        %v1242 = vpop.xlane.xlu0 %1241
        %1243 = vadd.xlane.f32.xlu0 %v1193
        %v1244 = vpop.xlane.xlu0 %1243
        %1245 = vadd.xlane.f32.xlu0 %v1194
        %v1246 = vpop.xlane.xlu0 %1245
        %1247 = vadd.xlane.f32.xlu0 %v1195
        %v1248 = vpop.xlane.xlu0 %1247
        %1249 = vadd.xlane.f32.xlu0 %v1196
        %v1250 = vpop.xlane.xlu0 %1249
        %1251 = vadd.xlane.f32.xlu0 %v1197
        %v1252 = vpop.xlane.xlu0 %1251
        %1253 = vadd.xlane.f32.xlu0 %v1198
        %v1254 = vpop.xlane.xlu0 %1253
        %1255 = vadd.xlane.f32.xlu0 %v1199
        %v1256 = vpop.xlane.xlu0 %1255
        %1257 = vadd.xlane.f32.xlu0 %v1200
        %v1258 = vpop.xlane.xlu0 %1257
        %1259 = vadd.xlane.f32.xlu0 %v1201
        %v1260 = vpop.xlane.xlu0 %1259
        %1261 = vadd.xlane.f32.xlu0 %v1202
        %v1262 = vpop.xlane.xlu0 %1261
        %1263 = vadd.xlane.f32.xlu0 %v1203
        %v1264 = vpop.xlane.xlu0 %1263
        %1265 = vadd.xlane.f32.xlu0 %v1204
        %v1266 = vpop.xlane.xlu0 %1265
        %1267 = vadd.xlane.f32.xlu0 %v1205
        %v1268 = vpop.xlane.xlu0 %1267
        %1269 = vadd.xlane.f32.xlu0 %v1206
        %v1270 = vpop.xlane.xlu0 %1269
        %v1303 = vlaneseq
        %v1304 = vshrl.u32 %v1303, 7
        %v1305 = vsub.s32 %v1139, %v1304
        %v1306 = vrot.slane %v1208, %v1305
        %v1307 = vadd.s32 %v1139, 4294967288
        %v1308 = vlaneseq
        %v1309 = vshrl.u32 %v1308, 7
        %v1310 = vsub.s32 %v1307, %v1309
        %v1311 = vrot.slane %v1210, %v1310
        %vm1312 = vcmask 130112
        %v1313 = vsel %vm1312, %v1311, %v1306
        %v1314 = vadd.s32 %v1139, 4294967280
        %v1315 = vlaneseq
        %v1316 = vshrl.u32 %v1315, 7
        %v1317 = vsub.s32 %v1314, %v1316
        %v1318 = vrot.slane %v1212, %v1317
        %vm1319 = vcmask 195712
        %v1320 = vsel %vm1319, %v1318, %v1313
        %v1321 = vadd.s32 %v1139, 4294967272
        %v1322 = vlaneseq
        %v1323 = vshrl.u32 %v1322, 7
        %v1324 = vsub.s32 %v1321, %v1323
        %v1325 = vrot.slane %v1214, %v1324
        %vm1326 = vcmask 261312
        %v1327 = vsel %vm1326, %v1325, %v1320
        %v1328 = vadd.s32 %v1139, 4294967264
        %v1329 = vlaneseq
        %v1330 = vshrl.u32 %v1329, 7
        %v1331 = vsub.s32 %v1328, %v1330
        %v1332 = vrot.slane %v1216, %v1331
        %vm1333 = vcmask 326912
        %v1334 = vsel %vm1333, %v1332, %v1327
        %v1335 = vadd.s32 %v1139, 4294967256
        %v1336 = vlaneseq
        %v1337 = vshrl.u32 %v1336, 7
        %v1338 = vsub.s32 %v1335, %v1337
        %v1339 = vrot.slane %v1218, %v1338
        %vm1340 = vcmask 392512
        %v1341 = vsel %vm1340, %v1339, %v1334
        %v1342 = vadd.s32 %v1139, 4294967248
        %v1343 = vlaneseq
        %v1344 = vshrl.u32 %v1343, 7
        %v1345 = vsub.s32 %v1342, %v1344
        %v1346 = vrot.slane %v1220, %v1345
        %vm1347 = vcmask 458112
        %v1348 = vsel %vm1347, %v1346, %v1341
        %v1349 = vadd.s32 %v1139, 4294967240
        %v1350 = vlaneseq
        %v1351 = vshrl.u32 %v1350, 7
        %v1352 = vsub.s32 %v1349, %v1351
        %v1353 = vrot.slane %v1222, %v1352
        %vm1354 = vcmask 523712
        %v1355 = vsel %vm1354, %v1353, %v1348
        %v1356 = vadd.s32 %v1139, 4294967232
        %v1357 = vlaneseq
        %v1358 = vshrl.u32 %v1357, 7
        %v1359 = vsub.s32 %v1356, %v1358
        %v1360 = vrot.slane %v1224, %v1359
        %vm1361 = vcmask 589312
        %v1362 = vsel %vm1361, %v1360, %v1355
        %v1363 = vadd.s32 %v1139, 4294967224
        %v1364 = vlaneseq
        %v1365 = vshrl.u32 %v1364, 7
        %v1366 = vsub.s32 %v1363, %v1365
        %v1367 = vrot.slane %v1226, %v1366
        %vm1368 = vcmask 654912
        %v1369 = vsel %vm1368, %v1367, %v1362
        %v1370 = vadd.s32 %v1139, 4294967216
        %v1371 = vlaneseq
        %v1372 = vshrl.u32 %v1371, 7
        %v1373 = vsub.s32 %v1370, %v1372
        %v1374 = vrot.slane %v1228, %v1373
        %vm1375 = vcmask 720512
        %v1376 = vsel %vm1375, %v1374, %v1369
        %v1377 = vadd.s32 %v1139, 4294967208
        %v1378 = vlaneseq
        %v1379 = vshrl.u32 %v1378, 7
        %v1380 = vsub.s32 %v1377, %v1379
        %v1381 = vrot.slane %v1230, %v1380
        %vm1382 = vcmask 786112
        %v1383 = vsel %vm1382, %v1381, %v1376
        %v1384 = vadd.s32 %v1139, 4294967200
        %v1385 = vlaneseq
        %v1386 = vshrl.u32 %v1385, 7
        %v1387 = vsub.s32 %v1384, %v1386
        %v1388 = vrot.slane %v1232, %v1387
        %vm1389 = vcmask 851712
        %v1390 = vsel %vm1389, %v1388, %v1383
        %v1391 = vadd.s32 %v1139, 4294967192
        %v1392 = vlaneseq
        %v1393 = vshrl.u32 %v1392, 7
        %v1394 = vsub.s32 %v1391, %v1393
        %v1395 = vrot.slane %v1234, %v1394
        %vm1396 = vcmask 917312
        %v1397 = vsel %vm1396, %v1395, %v1390
        %v1398 = vadd.s32 %v1139, 4294967184
        %v1399 = vlaneseq
        %v1400 = vshrl.u32 %v1399, 7
        %v1401 = vsub.s32 %v1398, %v1400
        %v1402 = vrot.slane %v1236, %v1401
        %vm1403 = vcmask 982912
        %v1404 = vsel %vm1403, %v1402, %v1397
        %v1405 = vadd.s32 %v1139, 4294967176
        %v1406 = vlaneseq
        %v1407 = vshrl.u32 %v1406, 7
        %v1408 = vsub.s32 %v1405, %v1407
        %v1409 = vrot.slane %v1238, %v1408
        %vm1410 = vcmask 1048512
        %v1411 = vsel %vm1410, %v1409, %v1404
        %v1412 = vlaneseq
        %v1413 = vshrl.u32 %v1412, 7
        %v1414 = vsub.s32 %v1139, %v1413
        %v1415 = vrot.slane %v1240, %v1414
        %v1416 = vlaneseq
        %v1417 = vshrl.u32 %v1416, 7
        %v1418 = vsub.s32 %v1307, %v1417
        %v1419 = vrot.slane %v1242, %v1418
        %v1420 = vsel %vm1312, %v1419, %v1415
        %v1421 = vlaneseq
        %v1422 = vshrl.u32 %v1421, 7
        %v1423 = vsub.s32 %v1314, %v1422
        %v1424 = vrot.slane %v1244, %v1423
        %v1425 = vsel %vm1319, %v1424, %v1420
        %v1426 = vlaneseq
        %v1427 = vshrl.u32 %v1426, 7
        %v1428 = vsub.s32 %v1321, %v1427
        %v1429 = vrot.slane %v1246, %v1428
        %v1430 = vsel %vm1326, %v1429, %v1425
        %v1431 = vlaneseq
        %v1432 = vshrl.u32 %v1431, 7
        %v1433 = vsub.s32 %v1328, %v1432
        %v1434 = vrot.slane %v1248, %v1433
        %v1435 = vsel %vm1333, %v1434, %v1430
        %v1436 = vlaneseq
        %v1437 = vshrl.u32 %v1436, 7
        %v1438 = vsub.s32 %v1335, %v1437
        %v1439 = vrot.slane %v1250, %v1438
        %v1440 = vsel %vm1340, %v1439, %v1435
        %v1441 = vlaneseq
        %v1442 = vshrl.u32 %v1441, 7
        %v1443 = vsub.s32 %v1342, %v1442
        %v1444 = vrot.slane %v1252, %v1443
        %v1445 = vsel %vm1347, %v1444, %v1440
        %v1446 = vlaneseq
        %v1447 = vshrl.u32 %v1446, 7
        %v1448 = vsub.s32 %v1349, %v1447
        %v1449 = vrot.slane %v1254, %v1448
        %v1450 = vsel %vm1354, %v1449, %v1445
        %v1451 = vlaneseq
        %v1452 = vshrl.u32 %v1451, 7
        %v1453 = vsub.s32 %v1356, %v1452
        %v1454 = vrot.slane %v1256, %v1453
        %v1455 = vsel %vm1361, %v1454, %v1450
        %v1456 = vlaneseq
        %v1457 = vshrl.u32 %v1456, 7
        %v1458 = vsub.s32 %v1363, %v1457
        %v1459 = vrot.slane %v1258, %v1458
        %v1460 = vsel %vm1368, %v1459, %v1455
        %v1461 = vlaneseq
        %v1462 = vshrl.u32 %v1461, 7
        %v1463 = vsub.s32 %v1370, %v1462
        %v1464 = vrot.slane %v1260, %v1463
        %v1465 = vsel %vm1375, %v1464, %v1460
        %v1466 = vlaneseq
        %v1467 = vshrl.u32 %v1466, 7
        %v1468 = vsub.s32 %v1377, %v1467
        %v1469 = vrot.slane %v1262, %v1468
        %v1470 = vsel %vm1382, %v1469, %v1465
        %v1471 = vlaneseq
        %v1472 = vshrl.u32 %v1471, 7
        %v1473 = vsub.s32 %v1384, %v1472
        %v1474 = vrot.slane %v1264, %v1473
        %v1475 = vsel %vm1389, %v1474, %v1470
        %v1476 = vlaneseq
        %v1477 = vshrl.u32 %v1476, 7
        %v1478 = vsub.s32 %v1391, %v1477
        %v1479 = vrot.slane %v1266, %v1478
        %v1480 = vsel %vm1396, %v1479, %v1475
        %v1481 = vlaneseq
        %v1482 = vshrl.u32 %v1481, 7
        %v1483 = vsub.s32 %v1398, %v1482
        %v1484 = vrot.slane %v1268, %v1483
        %v1485 = vsel %vm1403, %v1484, %v1480
        %v1486 = vlaneseq
        %v1487 = vshrl.u32 %v1486, 7
        %v1488 = vsub.s32 %v1405, %v1487
        %v1489 = vrot.slane %v1270, %v1488
        %v1490 = vsel %vm1410, %v1489, %v1485
        %vm1491 = vcmask 1041409
        %v1492 = vsel %vm1491, %v1490, %v1411
        %vm1494 = vcmask 1041408
        %v1495 = vsel %vm1494, %v1492, 0.0
        %1496 = vadd.xlane.f32.xlu0 %v1495
        %v1497 = vpop.xlane.xlu0 %1496
        %vm1498 = vcmask 1024
        %1499 = vst.msk [vmem:[%s285] sm:$0x3] %vm1498, %v1497
        %s1500 = sand.u32 %s106, 1
        %s1501 = scalar_lea.sflag [#allocation4], %s1500
        %s1502 = sand.u32 %s106, 1
        %s1503 = smul.addr %s1502, 128
        %s1504 = scalar_lea.vmem [#allocation8], %s1503
        %p1505 = scmp.lt.s32.totalorder %s25, 1
        %s1506 = scalar_select %p1505, %s25, 1
        %s1507 = smul.addr %s1506, 2
        %s1508 = scalar_lea.vmem %s4, %s1507
        // Predicated region
        $region45: #{tpu_custom_call.1} parent=31 // pred_check
          %p1509 = pneg %p116
        $region46: #{tpu_custom_call.1} parent=31 // pred_check_branch
          %1511 = sbr.rel (%p1509) target = $region48
        $region47: #{tpu_custom_call.1} parent=31 // pred_region
          %s1512 = smul.u32 2, %s25
          %s1514 = ssub.s32 2048, 2048
          %1515 = vsyncadd %s1501, %s1514
          %s1516 = smul.addr %s1512, 16
          %s1517 = smul.addr %s1516, 64
          %s1518 = scalar_lea.hbm %s3, %s1517
          %s1519 = sshll.u32 %s1504, 4
          %s1520 = int_to_ptr.vmem [resolvable:$true] %s1519
          %1525 = dma.vmem_to_hbm [thread:$0]  %s1520, 2048, %s1518, %s1501, 64, 64, 4
        $region48: #{tpu_custom_call.1} parent=31 // pred_fallthru
          _
        // Predicated region
        $region49: #{tpu_custom_call.1} parent=31 // pred_check
          %p1526 = pneg %p142
        $region50: #{tpu_custom_call.1} parent=31 // pred_check_branch
          %1528 = sbr.rel (%p1526) target = $region52
        $region51: #{tpu_custom_call.1} parent=31 // pred_region
          _
        $region52: #{tpu_custom_call.1} parent=31 // pred_fallthru
          _
      $region32: #{tpu_custom_call.1} parent=5 // pred_fallthru
        _
      %p1529 = scmp.le.s32.totalorder 2, %s20
      // Predicated region
      $region53: #{tpu_custom_call.1} parent=5 // pred_check
        %p1530 = pneg %p1529
      $region54: #{tpu_custom_call.1} parent=5 // pred_check_branch
        %1532 = sbr.rel (%p1530) target = $region56
      $region55: #{tpu_custom_call.1} parent=5 // pred_region
        %s1533 = ssub.s32 %s20, 2
        // Predicated region
        $region57: #{tpu_custom_call.1} parent=55 // pred_check
          %p1534 = pneg %p122
        $region58: #{tpu_custom_call.1} parent=55 // pred_check_branch
          %1536 = sbr.rel (%p1534) target = $region60
        $region59: #{tpu_custom_call.1} parent=55 // pred_region
          %s1537 = sand.u32 %s107, 1
          %s1538 = scalar_lea.sflag [#allocation4], %s1537
          %s1539 = sand.u32 %s107, 1
          %s1540 = smul.addr %s1539, 128
          %s1541 = scalar_lea.vmem [#allocation8], %s1540
          %1542 = dma.done %s1538, 2048
        $region60: #{tpu_custom_call.1} parent=55 // pred_fallthru
          _
        // Predicated region
        $region61: #{tpu_custom_call.1} parent=55 // pred_check
          %p1543 = pneg %p148
        $region62: #{tpu_custom_call.1} parent=55 // pred_check_branch
          %1545 = sbr.rel (%p1543) target = $region64
        $region63: #{tpu_custom_call.1} parent=55 // pred_region
          %p1546 = scmp.lt.s32.totalorder %s26, 1
          %s1547 = scalar_select %p1546, %s26, 1
          %s1548 = smul.addr %s1547, 2
          %s1549 = scalar_lea.vmem %s4, %s1548
        $region64: #{tpu_custom_call.1} parent=55 // pred_fallthru
          _
      $region56: #{tpu_custom_call.1} parent=5 // pred_fallthru
        _
    $region6: #{tpu_custom_call.1} parent=1 // loop_footer
      %s24 = sadd.s32 1, %s20
    $region7: #{tpu_custom_call.1} parent=1 // loop_footer_branch
      %19 = sbr.rel target = $region3
    $region8: #{tpu_custom_call.1} parent=1 // loop_exit
      _
    %1550 = vsyncpa [#allocation3], 1
    %s1551 = scalar_lea.sflag [#allocation3], 1
    %1552 = vsyncpa %s1551, 1
    %1553 = vsyncpa [#allocation6], 1
    %s1554 = scalar_lea.sflag [#allocation6], 1
    %1555 = vsyncpa %s1554, 1
    %1556 = vsyncpa [#allocation4], 1
    %s1557 = scalar_lea.sflag [#allocation4], 1
    %1558 = vsyncpa %s1557, 1

</llo_original>
